<compile_context>
chip_gen: v5e
topology: v5e:2x2
jax: 0.10.0
libtpu: 0.0.40
codegen_flags: <defaults>
</compile_context>

<pallas_src>
import jax
import jax.numpy as jnp
from jax.experimental import pallas as pl
from jax.experimental.pallas import tpu as pltpu  # noqa: F401  (TPU backend assumed)

# ----------------------------- configuration ------------------------------
N_BATCH = 2
L_RES = 8
NUM_ATOMS = 5              # resolution = 'backbone+CB'
RES_FEAT_DIM = 32
PAIR_FEAT_DIM = 16
MAX_AA_TYPES = 22
AA_UNK = 21
MAX_RELPOS = 32
NUM_STEPS = 100
K_SEQ = 20
NUM_FUNCS = 3
ANG_DIM = 1 + 2 * 2 * NUM_FUNCS   # AngularEncoding output per angle = 13

ATOM_N, ATOM_CA, ATOM_C, ATOM_O, ATOM_CB = 0, 1, 2, 3, 4

FREQ_BANDS = jnp.array([1.0, 2.0, 3.0, 1.0, 1.0 / 2.0, 1.0 / 3.0], jnp.float32)

RES_INFEAT = RES_FEAT_DIM + MAX_AA_TYPES * NUM_ATOMS * 3 + 3 * ANG_DIM + RES_FEAT_DIM  # 433
RES_INFEAT_PAD = 512                  # pad K to a lane/sublane-friendly multiple of 128

EPS_HEAD_HID = 3 * RES_FEAT_DIM       # 96  (crd|rot|seq hidden, fused)
EPS_OUT_PAD = 128                     # lane-dense fused output slab
SEQ_LO, SEQ_HI = 6, 6 + K_SEQ         # seq logits occupy lanes [6, 26)


# ----------------------------- small JAX helpers ---------------------------
def angular_encoding(x):
    """x: (..., d) -> (..., d * 13)."""
    y = x[..., None]
    code = jnp.concatenate([y, jnp.sin(y * FREQ_BANDS), jnp.cos(y * FREQ_BANDS)], axis=-1)
    return code.reshape(*x.shape[:-1], x.shape[-1] * ANG_DIM)


def normalize_vector(v, eps=0.0):
    return v / (jnp.linalg.norm(v, axis=-1, keepdims=True) + eps)


def construct_3d_basis(center, p1, p2):
    v1 = p1 - center
    e1 = normalize_vector(v1)
    v2 = p2 - center
    u2 = v2 - (e1 * v2).sum(-1, keepdims=True) * e1
    e2 = normalize_vector(u2)
    e3 = jnp.cross(e1, e2)
    return jnp.stack([e1, e2, e3], axis=-1)        # (..., 3, 3), columns e1,e2,e3


def global_to_local(R, t, q):
    # q: (N, L, A, 3); p = R^T (q - t)
    return jnp.einsum('nlij,nlai->nlaj', R, q - t[:, :, None, :])


def dihedral_from_four_points(p0, p1, p2, p3):
    v0 = p2 - p1
    v1 = p0 - p1
    v2 = p3 - p2
    u1 = jnp.cross(v0, v1)
    n1 = u1 / jnp.linalg.norm(u1, axis=-1, keepdims=True)
    u2 = jnp.cross(v0, v2)
    n2 = u2 / jnp.linalg.norm(u2, axis=-1, keepdims=True)
    sgn = jnp.sign((jnp.cross(v1, v2) * v0).sum(-1))
    cosv = jnp.clip((n1 * n2).sum(-1), -0.999999, 0.999999)
    return jnp.nan_to_num(sgn * jnp.arccos(cosv))


def get_backbone_dihedral_angles(pos_atoms, chain_nb, res_nb, mask):
    pos_n = pos_atoms[:, :, ATOM_N]
    pos_ca = pos_atoms[:, :, ATOM_CA]
    pos_c = pos_atoms[:, :, ATOM_C]

    d_res = jnp.abs(res_nb[:, 1:] - res_nb[:, :-1])
    same_chain = chain_nb[:, 1:] == chain_nb[:, :-1]
    consec = (d_res == 1) & same_chain & mask[:, :-1] & mask[:, 1:]
    n_term = jnp.pad(~consec, ((0, 0), (1, 0)), constant_values=True)
    c_term = jnp.pad(~consec, ((0, 0), (0, 1)), constant_values=True)

    omega = jnp.pad(dihedral_from_four_points(pos_ca[:, :-1], pos_c[:, :-1], pos_n[:, 1:], pos_ca[:, 1:]),
                    ((0, 0), (1, 0)))
    phi = jnp.pad(dihedral_from_four_points(pos_c[:, :-1], pos_n[:, 1:], pos_ca[:, 1:], pos_c[:, 1:]),
                  ((0, 0), (1, 0)))
    psi = jnp.pad(dihedral_from_four_points(pos_n[:, :-1], pos_ca[:, :-1], pos_c[:, :-1], pos_n[:, 1:]),
                  ((0, 0), (0, 1)))

    mask_bb = jnp.stack([~n_term, ~n_term, ~c_term], axis=-1).astype(jnp.float32)
    bb = jnp.stack([omega, phi, psi], axis=-1) * mask_bb
    return bb, mask_bb


def pairwise_dihedrals(pos_atoms):
    n, l = pos_atoms.shape[:2]
    pos_n = pos_atoms[:, :, ATOM_N]
    pos_ca = pos_atoms[:, :, ATOM_CA]
    pos_c = pos_atoms[:, :, ATOM_C]
    bshape = (n, l, l, 3)
    bi = lambda x: jnp.broadcast_to(x[:, :, None], bshape)
    bj = lambda x: jnp.broadcast_to(x[:, None, :], bshape)
    ir_phi = dihedral_from_four_points(bi(pos_c), bj(pos_n), bj(pos_ca), bj(pos_c))
    ir_psi = dihedral_from_four_points(bi(pos_n), bi(pos_ca), bi(pos_c), bj(pos_n))
    return jnp.stack([ir_phi, ir_psi], axis=-1)


def so3vec_to_rotation(w):
    theta = jnp.linalg.norm(w, axis=-1, keepdims=True)[..., None]     # (..., 1, 1)
    x, y, z = w[..., 0], w[..., 1], w[..., 2]
    zero = jnp.zeros_like(x)
    s = jnp.stack([zero, z, -y, -z, zero, x, y, -x, zero], axis=-1).reshape(*w.shape[:-1], 3, 3)
    a = jnp.sin(theta) / (theta + 1e-8)
    b = (1.0 - jnp.cos(theta)) / (theta ** 2 + 1e-8)
    eye = jnp.eye(3, dtype=w.dtype)
    return eye + a * s + b * (s @ s)


def rotation_to_so3vec(R):
    trace = R[..., 0, 0] + R[..., 1, 1] + R[..., 2, 2]
    cos_theta = jnp.clip((trace - 1.0) / 2.0, -1.0, 1.0)
    sin_theta = jnp.sqrt(jnp.clip(1.0 - cos_theta ** 2, 0.0, None))
    theta = jnp.arccos(cos_theta)
    coef = ((theta + 1e-8) / (2.0 * sin_theta + 2e-8))[..., None, None]
    logr = coef * (R - jnp.swapaxes(R, -1, -2))
    return jnp.stack([logr[..., 1, 2], logr[..., 2, 0], logr[..., 0, 1]], axis=-1)


def quaternion_1ijk_to_rotation_matrix(q):
    b, c, d = q[..., 0], q[..., 1], q[..., 2]
    s = jnp.sqrt(1.0 + b ** 2 + c ** 2 + d ** 2)
    a, b, c, d = 1.0 / s, b / s, c / s, d / s
    rows = jnp.stack([
        a * a + b * b - c * c - d * d, 2 * b * c - 2 * a * d, 2 * b * d + 2 * a * c,
        2 * b * c + 2 * a * d, a * a - b * b + c * c - d * d, 2 * c * d - 2 * a * b,
        2 * b * d - 2 * a * c, 2 * c * d + 2 * a * b, a * a - b * b - c * c + d * d,
    ], axis=-1)
    return rows.reshape(*q.shape[:-1], 3, 3)


def rotation_matrix_cosine_loss(R_pred, R_true):
    a = jnp.swapaxes(R_pred, -1, -2)   # rows = columns of R
    b = jnp.swapaxes(R_true, -1, -2)
    dot = (a * b).sum(-1)
    na = jnp.linalg.norm(a, axis=-1)
    nb = jnp.linalg.norm(b, axis=-1)
    cos = dot / jnp.maximum(na * nb, 1e-8)
    return (1.0 - cos).sum(-1)


def clampped_one_hot(x, num_classes):
    valid = ((x >= 0) & (x < num_classes)).astype(jnp.float32)
    xc = jnp.clip(x, 0, num_classes - 1)
    return jax.nn.one_hot(xc, num_classes, dtype=jnp.float32) * valid[..., None]


def cosine_variance_schedule(num_steps=NUM_STEPS, s=0.01):
    t = jnp.arange(0, num_steps + 1, dtype=jnp.float32)
    f_t = jnp.cos((jnp.pi / 2.0) * ((t / num_steps) + s) / (1.0 + s)) ** 2
    alpha_bars = f_t / f_t[0]
    betas = 1.0 - (alpha_bars[1:] / alpha_bars[:-1])
    betas = jnp.concatenate([jnp.zeros((1,), jnp.float32), betas])
    betas = jnp.clip(betas, None, 0.999)
    alphas = 1.0 - betas
    alpha_bars = jnp.exp(jnp.cumsum(jnp.log(alphas)))
    return betas, alphas, alpha_bars


# ----------------------------- Pallas kernels ------------------------------
def _relu(x):
    return jnp.maximum(x, 0.0)


def _dot(a, b):
    # bf16 MXU matmul with f32 accumulation; masks / activations around it stay f32.
    return jnp.dot(a.astype(jnp.bfloat16), b.astype(jnp.bfloat16),
                   preferred_element_type=jnp.float32)


def _residue_mlp_kernel(x_ref, m_ref, w1, b1, w2, b2, w3, b3, w4, b4, o_ref):
    # Single whole-array block: rows = N*L, K padded to 512.
    x = x_ref[...]
    h = _relu(_dot(x, w1[...]) + b1[...])
    h = _relu(_dot(h, w2[...]) + b2[...])
    h = _relu(_dot(h, w3[...]) + b3[...])
    y = _dot(h, w4[...]) + b4[...]
    o_ref[...] = y * m_ref[...]


def _pair_kernel(dsq_ref, coef_ref, mavail_ref, aap_ref, rp_ref, dih_ref, smask_ref, pmask_ref,
                 dw1, db1, dw2, db2,
                 ow1a, ow1b, ow1c, ow1d, ob1, ow2, ob2, ow3, ob3,
                 o_ref):
    # Single whole-array block over the flattened (N*L*L, .) pair rows.
    # coef_ref already holds softplus(aapair_to_distcoef[aa_pair])  (hoisted to JAX).
    dgauss = jnp.exp(-coef_ref[...] * dsq_ref[...]) * mavail_ref[...]
    h = _relu(_dot(dgauss, dw1[...]) + db1[...])
    fdist = _relu(_dot(h, dw2[...]) + db2[...])
    smask = smask_ref[...]
    fdist = fdist * smask
    fdih = dih_ref[...] * smask
    # split-weight trick == Linear on concat([aapair, relpos, dist, dihed])
    z = (_dot(aap_ref[...], ow1a[...]) + _dot(rp_ref[...], ow1b[...])
         + _dot(fdist, ow1c[...]) + _dot(fdih, ow1d[...]) + ob1[...])
    z = _relu(z)
    z = _relu(_dot(z, ow2[...]) + ob2[...])
    z = _dot(z, ow3[...]) + ob3[...]
    o_ref[...] = z * pmask_ref[...]


def _eps_kernel(res_ref, semb_ref, pagg_ref, tbias_ref,
                mw1a, mw1b, mw1c, mb1, mw2, mb2,
                hw1, hw2, hb2, hw3, hb3,
                o_ref):
    # res_feat_mixer on concat([res_feat, seq_embedding, pair_agg]) via split weights.
    h = _relu(_dot(res_ref[...], mw1a[...]) + _dot(semb_ref[...], mw1b[...])
              + _dot(pagg_ref[...], mw1c[...]) + mb1[...])
    mixed = _dot(h, mw2[...]) + mb2[...]
    # TODO(synk): GAEncoder (geometric / IPA attention over pair_feat and frames) is approximated
    # by the masked-mean pair aggregation folded into the mixer above; full attention is omitted.

    # Fused crd/rot/seq heads.  tbias = temb @ w1b + b1 (per head, stacked) is precomputed in JAX.
    hh = _relu(_dot(mixed, hw1[...]) + tbias_ref[...])       # (rows, 96)
    hh = _relu(_dot(hh, hw2[...]) + hb2[...])                # block-diagonal per-head w2
    y = _dot(hh, hw3[...]) + hb3[...]                        # (rows, 128): crd 0:3 | rot 3:6 | seq 6:26 | pad

    # softmax over the seq lanes only (masked, no lane slicing); EUP reciprocal for the divide.
    lane = jax.lax.broadcasted_iota(jnp.int32, y.shape, 1)
    is_seq = (lane >= SEQ_LO) & (lane < SEQ_HI)
    logits = jnp.where(is_seq, y, -1e30)
    m = jnp.max(logits, axis=-1, keepdims=True)
    e = jnp.exp(logits - m)
    s = jnp.sum(e, axis=-1, keepdims=True)
    probs = e * pl.reciprocal(s, approx=True)
    o_ref[...] = jnp.where(is_seq, probs, y)


# ----------------------------- kernel wrappers ------------------------------
def residue_mlp(x, mask_rows, params):
    rows = x.shape[0]
    weights = [params[k] for k in ('w1', 'b1', 'w2', 'b2', 'w3', 'b3', 'w4', 'b4')]
    # Whole-array single block (no grid): rows = N*L is tiny; grid steps would only add overhead.
    return pl.pallas_call(
        _residue_mlp_kernel,
        out_shape=jax.ShapeDtypeStruct((rows, RES_FEAT_DIM), jnp.float32),
    )(x, mask_rows, *weights)


def pair_kernel_call(params, dsq, coef, mavail, aap, rp, dih, smask, pmask):
    rows = dsq.shape[0]                       # N*L*L, flattened in the caller
    wnames = ('dist_w1', 'dist_b1', 'dist_w2', 'dist_b2',
              'out_w1_aa', 'out_w1_rp', 'out_w1_dist', 'out_w1_dih', 'out_b1',
              'out_w2', 'out_b2', 'out_w3', 'out_b3')
    weights = [params[k] for k in wnames]
    # TODO(synk): at realistic L (>=128) tile the N*L*L row axis with a grid to stay within
    # v7x's 64 MiB VMEM; at L=8 a single whole-array block is optimal.
    return pl.pallas_call(
        _pair_kernel,
        out_shape=jax.ShapeDtypeStruct((rows, PAIR_FEAT_DIM), jnp.float32),
    )(dsq, coef, mavail, aap, rp, dih, smask, pmask, *weights)


def eps_mlp_call(params, res_rows, seq_rows, pagg_rows, tbias_rows):
    rows = res_rows.shape[0]
    out = pl.pallas_call(
        _eps_kernel,
        out_shape=jax.ShapeDtypeStruct((rows, EPS_OUT_PAD), jnp.float32),
    )(res_rows, seq_rows, pagg_rows, tbias_rows,
      params['mix_w1a'], params['mix_w1b'], params['mix_w1c'], params['mix_b1'],
      params['mix_w2'], params['mix_b2'],
      params['head_w1'], params['head_w2'], params['head_b2'],
      params['head_w3'], params['head_b3'])
    crd = out[:, 0:3]
    rot = out[:, 3:6]
    cden = out[:, SEQ_LO:SEQ_HI]
    return crd, rot, cden


# ----------------------------- module forward (JAX glue) --------------------
def residue_embed_forward(params, aa, res_nb, chain_nb, pos_atoms, mask_atoms,
                          fragment_type, structure_mask, sequence_mask):
    n, l = aa.shape
    mask_residue = mask_atoms[:, :, ATOM_CA]
    if sequence_mask is not None:
        aa = jnp.where(sequence_mask, aa, AA_UNK)
    aa_feat = params['aatype_embed'][aa]

    R = construct_3d_basis(pos_atoms[:, :, ATOM_CA], pos_atoms[:, :, ATOM_C], pos_atoms[:, :, ATOM_N])
    t = pos_atoms[:, :, ATOM_CA]
    crd = global_to_local(R, t, pos_atoms) * mask_atoms[..., None].astype(jnp.float32)
    place = jax.nn.one_hot(aa, MAX_AA_TYPES, dtype=jnp.float32)
    crd_feat = (place[:, :, :, None, None] * crd[:, :, None, :, :]).reshape(n, l, MAX_AA_TYPES * NUM_ATOMS * 3)
    if structure_mask is not None:
        crd_feat = crd_feat * structure_mask[..., None].astype(jnp.float32)

    bb_dihed, mask_bb = get_backbone_dihedral_angles(pos_atoms, chain_nb, res_nb, mask_residue)
    dihed_feat = (angular_encoding(bb_dihed[..., None]) * mask_bb[..., None]).reshape(n, l, 3 * ANG_DIM)
    if structure_mask is not None:
        sm = structure_mask
        dihed_mask = sm & jnp.roll(sm, 1, axis=1) & jnp.roll(sm, -1, axis=1)
        dihed_feat = dihed_feat * dihed_mask[..., None].astype(jnp.float32)

    type_feat = params['type_embed'][fragment_type]
    x = jnp.concatenate([aa_feat, crd_feat, dihed_feat, type_feat], axis=-1).reshape(n * l, RES_INFEAT)
    x = jnp.pad(x, ((0, 0), (0, RES_INFEAT_PAD - RES_INFEAT)))          # lane-aligned K = 512
    m = mask_residue.reshape(n * l, 1).astype(jnp.float32)
    out = residue_mlp(x, m, params)
    return out.reshape(n, l, RES_FEAT_DIM)


def pair_embed_forward(params, aa, res_nb, chain_nb, pos_atoms, mask_atoms,
                       structure_mask, sequence_mask):
    n, l = aa.shape
    a = NUM_ATOMS
    rows = n * l * l
    mask_residue = mask_atoms[:, :, ATOM_CA]
    mask_pair = (mask_residue[:, :, None] & mask_residue[:, None, :]).reshape(rows, 1).astype(jnp.float32)
    if sequence_mask is not None:
        aa = jnp.where(sequence_mask, aa, AA_UNK)

    aa_pair = aa[:, :, None] * MAX_AA_TYPES + aa[:, None, :]
    feat_aapair = params['aa_pair_embed'][aa_pair].reshape(rows, PAIR_FEAT_DIM)

    same_chain = (chain_nb[:, :, None] == chain_nb[:, None, :]).astype(jnp.float32)
    relpos = jnp.clip(res_nb[:, :, None] - res_nb[:, None, :], -MAX_RELPOS, MAX_RELPOS)
    feat_relpos = (params['relpos_embed'][relpos + MAX_RELPOS] * same_chain[..., None]).reshape(rows, PAIR_FEAT_DIM)

    diff = pos_atoms[:, :, None, :, None, :] - pos_atoms[:, None, :, None, :, :]
    dsq = ((diff ** 2).sum(-1) / 100.0).reshape(rows, a * a)            # angstrom^2 -> nm^2
    # softplus hoisted off the kernel hot path (numerically stable).
    coef = jax.nn.softplus(params['aapair_to_distcoef'][aa_pair]).reshape(rows, a * a)
    mask_atom_pair = (mask_atoms[:, :, None, :, None] & mask_atoms[:, None, :, None, :]
                      ).reshape(rows, a * a).astype(jnp.float32)

    feat_dihed = angular_encoding(pairwise_dihedrals(pos_atoms)).reshape(rows, 2 * ANG_DIM)

    if structure_mask is not None:
        smask = (structure_mask[:, :, None] & structure_mask[:, None, :]).reshape(rows, 1).astype(jnp.float32)
    else:
        smask = jnp.ones((rows, 1), jnp.float32)

    out = pair_kernel_call(params, dsq, coef, mask_atom_pair,
                           feat_aapair, feat_relpos, feat_dihed, smask, mask_pair)
    return out.reshape(n, l, l, PAIR_FEAT_DIM)


def eps_net_forward(params, v_t, p_t, s_t, res_feat, pair_feat, beta, mask_generate, mask_res):
    n, l = s_t.shape
    rows = n * l
    R = so3vec_to_rotation(v_t)
    seq_emb = params['cur_seq_embed'][jnp.clip(s_t, 0, 24)]

    # Time-embedding bias for the fused heads, precomputed in JAX (K=3 matmul hoisted off the MXU).
    t_embed = jnp.stack([beta, jnp.sin(beta), jnp.cos(beta)], axis=-1)              # (n, 3)
    tbias = t_embed @ params['head_w1b'] + params['head_b1']                        # (n, 3*D)
    tbias_rows = jnp.broadcast_to(tbias[:, None, :], (n, l, EPS_HEAD_HID)).reshape(rows, EPS_HEAD_HID)

    # Masked-mean pair aggregation (stand-in for the GAEncoder pair conditioning).
    mask_f = mask_res.astype(jnp.float32)
    wj = mask_f[:, None, :, None]
    pagg = (pair_feat * wj).sum(2) / (wj.sum(2) + 1e-8)                             # (n, l, P)

    crd, rot, cden = eps_mlp_call(params,
                                  res_feat.reshape(rows, RES_FEAT_DIM),
                                  seq_emb.reshape(rows, RES_FEAT_DIM),
                                  pagg.reshape(rows, PAIR_FEAT_DIM),
                                  tbias_rows)
    eps_crd = crd.reshape(n, l, 3)
    eps_rot = rot.reshape(n, l, 3)
    c_denoised = cden.reshape(n, l, K_SEQ)

    eps_pos = jnp.einsum('nlij,nlj->nli', R, eps_crd)
    eps_pos = jnp.where(mask_generate[..., None], eps_pos, 0.0)

    U = quaternion_1ijk_to_rotation_matrix(eps_rot)
    R_next = R @ U
    v_next = rotation_to_so3vec(R_next)
    v_next = jnp.where(mask_generate[..., None], v_next, v_t)
    return v_next, R_next, eps_pos, c_denoised


def categorical_posterior(x_t, c_0, t, sched):
    k = K_SEQ
    c_t = clampped_one_hot(x_t, k)
    alpha = sched['alphas'][t][:, None, None]
    alpha_bar = sched['alpha_bars'][t][:, None, None]
    theta = (alpha * c_t + (1.0 - alpha) / k) * (alpha_bar * c_0 + (1.0 - alpha_bar) / k)
    return theta / (theta.sum(-1, keepdims=True) + 1e-8)


def full_dpm_forward(params, key, v_0, p_0, s_0, res_feat, pair_feat, mask_generate, mask_res,
                     denoise_structure=True, denoise_sequence=True):
    n, l = mask_res.shape
    sched = params['sched']
    kt, krot, kpos, kseq = jax.random.split(key, 4)
    t = jax.random.randint(kt, (n,), 0, NUM_STEPS)
    p_0 = (p_0 - params['position_mean']) / params['position_scale']

    R_0 = so3vec_to_rotation(v_0)
    alpha_bar = sched['alpha_bars'][t]
    c0 = jnp.sqrt(alpha_bar)[:, None, None]
    c1 = jnp.sqrt(1.0 - alpha_bar)[:, None, None]
    mgen_f = mask_generate.astype(jnp.float32)

    if denoise_structure:
        # TODO(synk): diffab samples IGSO(3) angular noise via ApproxAngularDistribution; approximated
        # here with an isotropic Gaussian rotation vector of matching scale.
        e_scaled = jax.random.normal(krot, v_0.shape) * c1
        E = so3vec_to_rotation(e_scaled)
        R0_scaled = so3vec_to_rotation(c0 * v_0)
        v_noisy = rotation_to_so3vec(E @ R0_scaled)
        v_noisy = jnp.where(mask_generate[..., None], v_noisy, v_0)

        eps_p = jax.random.normal(kpos, p_0.shape)
        p_noisy = c0 * p_0 + c1 * eps_p
        p_noisy = jnp.where(mask_generate[..., None], p_noisy, p_0)
    else:
        v_noisy, p_noisy, eps_p = v_0, p_0, jnp.zeros_like(p_0)

    if denoise_sequence:
        c_0 = clampped_one_hot(s_0, K_SEQ)
        c_noisy = alpha_bar[:, None, None] * c_0 + (1.0 - alpha_bar)[:, None, None] / K_SEQ
        s_sampled = jax.random.categorical(kseq, jnp.log(c_noisy + 1e-8), axis=-1)
        s_noisy = jnp.where(mask_generate, s_sampled, s_0)
    else:
        s_noisy = s_0

    beta = sched['betas'][t]
    v_pred, R_pred, eps_p_pred, c_denoised = eps_net_forward(
        params, v_noisy, p_noisy, s_noisy, res_feat, pair_feat, beta, mask_generate, mask_res)

    denom = mgen_f.sum() + 1e-8
    loss_rot = (rotation_matrix_cosine_loss(R_pred, R_0) * mgen_f).sum() / denom
    loss_pos = (((eps_p_pred - eps_p) ** 2).sum(-1) * mgen_f).sum() / denom

    post_true = categorical_posterior(s_noisy, clampped_one_hot(s_0, K_SEQ), t, sched)
    post_pred = categorical_posterior(s_noisy, c_denoised, t, sched)
    log_post_pred = jnp.log(post_pred + 1e-8)
    kl = jnp.where(post_true > 0,
                   post_true * (jnp.log(jnp.clip(post_true, 1e-30, None)) - log_post_pred), 0.0).sum(-1)
    loss_seq = (kl * mgen_f).sum() / denom
    return {'rot': loss_rot, 'pos': loss_pos, 'seq': loss_seq}


def model_forward(params, batch, key):
    mask_generate = batch['generate_flag']
    mask_res = batch['mask']
    context_mask = batch['mask_heavyatom'][:, :, ATOM_CA] & (~batch['generate_flag'])
    structure_mask = context_mask        # train_structure default True
    sequence_mask = context_mask         # train_sequence default True

    res_feat = residue_embed_forward(params, batch['aa'], batch['res_nb'], batch['chain_nb'],
                                     batch['pos_heavyatom'], batch['mask_heavyatom'],
                                     batch['fragment_type'], structure_mask, sequence_mask)
    pair_feat = pair_embed_forward(params, batch['aa'], batch['res_nb'], batch['chain_nb'],
                                   batch['pos_heavyatom'], batch['mask_heavyatom'],
                                   structure_mask, sequence_mask)
    R_0 = construct_3d_basis(batch['pos_heavyatom'][:, :, ATOM_CA],
                             batch['pos_heavyatom'][:, :, ATOM_C],
                             batch['pos_heavyatom'][:, :, ATOM_N])
    p_0 = batch['pos_heavyatom'][:, :, ATOM_CA]
    v_0 = rotation_to_so3vec(R_0)
    s_0 = batch['aa']
    return full_dpm_forward(params, key, v_0, p_0, s_0, res_feat, pair_feat, mask_generate, mask_res)


# ----------------------------- parameter init -------------------------------
def _linear(key, din, dout):
    kw, _ = jax.random.split(key)
    w = jax.random.normal(kw, (din, dout), jnp.float32) * (1.0 / jnp.sqrt(din))
    b = jnp.zeros((1, dout), jnp.float32)
    return w, b


def init_params(key):
    keys = iter(jax.random.split(key, 64))
    p = {}
    # ResidueEmbedding
    p['aatype_embed'] = jax.random.normal(next(keys), (MAX_AA_TYPES, RES_FEAT_DIM)) * 0.1
    type_emb = jax.random.normal(next(keys), (10, RES_FEAT_DIM)) * 0.1
    p['type_embed'] = type_emb.at[0].set(0.0)                       # padding_idx=0
    w1, p['b1'] = _linear(next(keys), RES_INFEAT, RES_FEAT_DIM * 2)
    p['w1'] = jnp.pad(w1, ((0, RES_INFEAT_PAD - RES_INFEAT), (0, 0)))   # K padded to 512
    p['w2'], p['b2'] = _linear(next(keys), RES_FEAT_DIM * 2, RES_FEAT_DIM)
    p['w3'], p['b3'] = _linear(next(keys), RES_FEAT_DIM, RES_FEAT_DIM)
    p['w4'], p['b4'] = _linear(next(keys), RES_FEAT_DIM, RES_FEAT_DIM)
    # PairEmbedding
    p['aa_pair_embed'] = jax.random.normal(next(keys), (MAX_AA_TYPES ** 2, PAIR_FEAT_DIM)) * 0.1
    p['relpos_embed'] = jax.random.normal(next(keys), (2 * MAX_RELPOS + 1, PAIR_FEAT_DIM)) * 0.1
    p['aapair_to_distcoef'] = jnp.zeros((MAX_AA_TYPES ** 2, NUM_ATOMS * NUM_ATOMS), jnp.float32)  # init zeros_
    p['dist_w1'], p['dist_b1'] = _linear(next(keys), NUM_ATOMS * NUM_ATOMS, PAIR_FEAT_DIM)
    p['dist_w2'], p['dist_b2'] = _linear(next(keys), PAIR_FEAT_DIM, PAIR_FEAT_DIM)
    out_w1, p['out_b1'] = _linear(next(keys), 3 * PAIR_FEAT_DIM + 2 * ANG_DIM, PAIR_FEAT_DIM)
    p['out_w1_aa'] = out_w1[:PAIR_FEAT_DIM]
    p['out_w1_rp'] = out_w1[PAIR_FEAT_DIM:2 * PAIR_FEAT_DIM]
    p['out_w1_dist'] = out_w1[2 * PAIR_FEAT_DIM:3 * PAIR_FEAT_DIM]
    p['out_w1_dih'] = out_w1[3 * PAIR_FEAT_DIM:]
    p['out_w2'], p['out_b2'] = _linear(next(keys), PAIR_FEAT_DIM, PAIR_FEAT_DIM)
    p['out_w3'], p['out_b3'] = _linear(next(keys), PAIR_FEAT_DIM, PAIR_FEAT_DIM)
    # EpsilonNet (mixer + fused crd/rot/seq heads)
    p['cur_seq_embed'] = jax.random.normal(next(keys), (25, RES_FEAT_DIM)) * 0.1
    mix_w1, p['mix_b1'] = _linear(next(keys), 2 * RES_FEAT_DIM, RES_FEAT_DIM)
    p['mix_w1a'], p['mix_w1b'] = mix_w1[:RES_FEAT_DIM], mix_w1[RES_FEAT_DIM:]
    p['mix_w1c'], _ = _linear(next(keys), PAIR_FEAT_DIM, RES_FEAT_DIM)   # pair-agg projection (GAEncoder approx)
    p['mix_w2'], p['mix_b2'] = _linear(next(keys), RES_FEAT_DIM, RES_FEAT_DIM)

    D = RES_FEAT_DIM
    w1a_list, w1b_list, b1_list, b2_list = [], [], [], []
    hw2 = jnp.zeros((EPS_HEAD_HID, EPS_HEAD_HID), jnp.float32)
    hw3 = jnp.zeros((EPS_HEAD_HID, EPS_OUT_PAD), jnp.float32)
    hb3 = jnp.zeros((1, EPS_OUT_PAD), jnp.float32)
    col = 0
    for hidx, dout in enumerate((3, 3, K_SEQ)):          # crd | rot | seq
        w1, b1 = _linear(next(keys), D + 3, D)
        w1a_list.append(w1[:D]); w1b_list.append(w1[D:]); b1_list.append(b1)
        w2, b2 = _linear(next(keys), D, D)
        hw2 = hw2.at[hidx * D:(hidx + 1) * D, hidx * D:(hidx + 1) * D].set(w2)
        b2_list.append(b2)
        w3, b3 = _linear(next(keys), D, dout)
        hw3 = hw3.at[hidx * D:(hidx + 1) * D, col:col + dout].set(w3)
        hb3 = hb3.at[:, col:col + dout].set(b3)
        col += dout
    p['head_w1'] = jnp.concatenate(w1a_list, axis=1)     # (D, 3D)
    p['head_w1b'] = jnp.concatenate(w1b_list, axis=1)    # (3, 3D)   -- used in JAX to build tbias
    p['head_b1'] = jnp.concatenate(b1_list, axis=1)      # (1, 3D)
    p['head_w2'] = hw2                                   # (3D, 3D) block-diagonal
    p['head_b2'] = jnp.concatenate(b2_list, axis=1)      # (1, 3D)
    p['head_w3'] = hw3                                   # (3D, 128) block placed, zero pad
    p['head_b3'] = hb3                                   # (1, 128)

    # diffusion schedule / position normalization
    betas, alphas, alpha_bars = cosine_variance_schedule(NUM_STEPS)
    p['sched'] = {'betas': betas, 'alphas': alphas, 'alpha_bars': alpha_bars}
    p['position_mean'] = jnp.zeros((3,), jnp.float32)
    p['position_scale'] = jnp.array([10.0], jnp.float32)
    return p


# ----------------------------- main ------------------------------------------
if __name__ == "__main__":
    key = jax.random.PRNGKey(0)
    kp, kb, kd = jax.random.split(key, 3)
    params = init_params(kp)

    n, l, a = N_BATCH, L_RES, NUM_ATOMS
    keys = jax.random.split(kb, 4)
    aa = jax.random.randint(keys[0], (n, l), 0, 20)
    res_nb = jnp.broadcast_to(jnp.arange(1, l + 1, dtype=jnp.int32), (n, l))
    chain_nb = jnp.concatenate([jnp.zeros((n, l // 2), jnp.int32),
                                jnp.ones((n, l - l // 2), jnp.int32)], axis=1)
    pos_heavyatom = (jax.random.normal(keys[1], (n, l, a, 3)) * 2.0
                     + jnp.arange(l, dtype=jnp.float32)[None, :, None, None] * 3.8)
    mask_heavyatom = jnp.ones((n, l, a), bool)
    fragment_type = jnp.where(chain_nb == 0, 1, 2)
    generate_flag = jnp.zeros((n, l), bool).at[:, 2:5].set(True)
    mask_res = jnp.ones((n, l), bool)

    batch = {
        'aa': aa, 'res_nb': res_nb, 'chain_nb': chain_nb,
        'pos_heavyatom': pos_heavyatom.astype(jnp.float32),
        'mask_heavyatom': mask_heavyatom,
        'fragment_type': fragment_type,
        'generate_flag': generate_flag,
        'mask': mask_res,
    }

    loss_dict = jax.jit(model_forward)(params, batch, kd)
    loss_dict = jax.block_until_ready(loss_dict)
    assert all(bool(jnp.isfinite(v)) for v in loss_dict.values())
    print("KERNEL_OK")
</pallas_src>

<mosaic_0001>
module attributes {stable_mosaic.version = 11 : i64} {
  func.func @_residue_mlp_kernel(%arg0: memref<16x512xf32, #tpu.memory_space<vmem>>, %arg1: memref<16x1xf32, #tpu.memory_space<vmem>>, %arg2: memref<512x64xf32, #tpu.memory_space<vmem>>, %arg3: memref<1x64xf32, #tpu.memory_space<vmem>>, %arg4: memref<64x32xf32, #tpu.memory_space<vmem>>, %arg5: memref<1x32xf32, #tpu.memory_space<vmem>>, %arg6: memref<32x32xf32, #tpu.memory_space<vmem>>, %arg7: memref<1x32xf32, #tpu.memory_space<vmem>>, %arg8: memref<32x32xf32, #tpu.memory_space<vmem>>, %arg9: memref<1x32xf32, #tpu.memory_space<vmem>>, %arg10: memref<16x32xf32, #tpu.memory_space<vmem>>) attributes {dimension_semantics = [], scalar_prefetch = 0 : i64, scratch_operands = 0 : i64, tpu.core_type = #tpu.core_type<tc>} {
    %c0 = arith.constant 0 : index
    %c0_0 = arith.constant 0 : index
    %0 = vector.load %arg0[%c0, %c0_0] : memref<16x512xf32, #tpu.memory_space<vmem>>, vector<16x512xf32>
    %c0_1 = arith.constant 0 : index
    %c0_2 = arith.constant 0 : index
    %1 = vector.load %arg2[%c0_1, %c0_2] : memref<512x64xf32, #tpu.memory_space<vmem>>, vector<512x64xf32>
    %2 = arith.truncf %0 : vector<16x512xf32> to vector<16x512xbf16>
    %3 = arith.truncf %1 : vector<512x64xf32> to vector<512x64xbf16>
    %cst = arith.constant dense<0.000000e+00> : vector<16x64xf32>
    %4 = tpu.matmul %2, %3, %cst {dimension_numbers = #tpu.dot_dimension_numbers<[1], [0], [0], [1], [0, 0, 1, 1], [], []>} : vector<16x512xbf16>, vector<512x64xbf16>, vector<16x64xf32> -> vector<16x64xf32>
    %c0_3 = arith.constant 0 : index
    %c0_4 = arith.constant 0 : index
    %5 = vector.load %arg3[%c0_3, %c0_4] : memref<1x64xf32, #tpu.memory_space<vmem>>, vector<1x64xf32>
    %6 = vector.broadcast %5 : vector<1x64xf32> to vector<16x64xf32>
    %7 = arith.addf %4, %6 : vector<16x64xf32>
    %cst_5 = arith.constant 0.000000e+00 : f32
    %8 = vector.broadcast %cst_5 : f32 to vector<16x64xf32>
    %9 = arith.maximumf %7, %8 : vector<16x64xf32>
    %c0_6 = arith.constant 0 : index
    %c0_7 = arith.constant 0 : index
    %10 = vector.load %arg4[%c0_6, %c0_7] : memref<64x32xf32, #tpu.memory_space<vmem>>, vector<64x32xf32>
    %11 = arith.truncf %9 : vector<16x64xf32> to vector<16x64xbf16>
    %12 = arith.truncf %10 : vector<64x32xf32> to vector<64x32xbf16>
    %cst_8 = arith.constant dense<0.000000e+00> : vector<16x32xf32>
    %13 = tpu.matmul %11, %12, %cst_8 {dimension_numbers = #tpu.dot_dimension_numbers<[1], [0], [0], [1], [0, 0, 1, 1], [], []>} : vector<16x64xbf16>, vector<64x32xbf16>, vector<16x32xf32> -> vector<16x32xf32>
    %c0_9 = arith.constant 0 : index
    %c0_10 = arith.constant 0 : index
    %14 = vector.load %arg5[%c0_9, %c0_10] : memref<1x32xf32, #tpu.memory_space<vmem>>, vector<1x32xf32>
    %15 = vector.broadcast %14 : vector<1x32xf32> to vector<16x32xf32>
    %16 = arith.addf %13, %15 : vector<16x32xf32>
    %cst_11 = arith.constant 0.000000e+00 : f32
    %17 = vector.broadcast %cst_11 : f32 to vector<16x32xf32>
    %18 = arith.maximumf %16, %17 : vector<16x32xf32>
    %c0_12 = arith.constant 0 : index
    %c0_13 = arith.constant 0 : index
    %19 = vector.load %arg6[%c0_12, %c0_13] : memref<32x32xf32, #tpu.memory_space<vmem>>, vector<32x32xf32>
    %20 = arith.truncf %18 : vector<16x32xf32> to vector<16x32xbf16>
    %21 = arith.truncf %19 : vector<32x32xf32> to vector<32x32xbf16>
    %cst_14 = arith.constant dense<0.000000e+00> : vector<16x32xf32>
    %22 = tpu.matmul %20, %21, %cst_14 {dimension_numbers = #tpu.dot_dimension_numbers<[1], [0], [0], [1], [0, 0, 1, 1], [], []>} : vector<16x32xbf16>, vector<32x32xbf16>, vector<16x32xf32> -> vector<16x32xf32>
    %c0_15 = arith.constant 0 : index
    %c0_16 = arith.constant 0 : index
    %23 = vector.load %arg7[%c0_15, %c0_16] : memref<1x32xf32, #tpu.memory_space<vmem>>, vector<1x32xf32>
    %24 = vector.broadcast %23 : vector<1x32xf32> to vector<16x32xf32>
    %25 = arith.addf %22, %24 : vector<16x32xf32>
    %cst_17 = arith.constant 0.000000e+00 : f32
    %26 = vector.broadcast %cst_17 : f32 to vector<16x32xf32>
    %27 = arith.maximumf %25, %26 : vector<16x32xf32>
    %c0_18 = arith.constant 0 : index
    %c0_19 = arith.constant 0 : index
    %28 = vector.load %arg8[%c0_18, %c0_19] : memref<32x32xf32, #tpu.memory_space<vmem>>, vector<32x32xf32>
    %29 = arith.truncf %27 : vector<16x32xf32> to vector<16x32xbf16>
    %30 = arith.truncf %28 : vector<32x32xf32> to vector<32x32xbf16>
    %cst_20 = arith.constant dense<0.000000e+00> : vector<16x32xf32>
    %31 = tpu.matmul %29, %30, %cst_20 {dimension_numbers = #tpu.dot_dimension_numbers<[1], [0], [0], [1], [0, 0, 1, 1], [], []>} : vector<16x32xbf16>, vector<32x32xbf16>, vector<16x32xf32> -> vector<16x32xf32>
    %c0_21 = arith.constant 0 : index
    %c0_22 = arith.constant 0 : index
    %32 = vector.load %arg9[%c0_21, %c0_22] : memref<1x32xf32, #tpu.memory_space<vmem>>, vector<1x32xf32>
    %33 = vector.broadcast %32 : vector<1x32xf32> to vector<16x32xf32>
    %34 = arith.addf %31, %33 : vector<16x32xf32>
    %c0_23 = arith.constant 0 : index
    %c0_24 = arith.constant 0 : index
    %35 = vector.load %arg1[%c0_23, %c0_24] : memref<16x1xf32, #tpu.memory_space<vmem>>, vector<16x1xf32>
    %36 = vector.broadcast %35 : vector<16x1xf32> to vector<16x32xf32>
    %37 = arith.mulf %34, %36 : vector<16x32xf32>
    %c0_25 = arith.constant 0 : index
    %c0_26 = arith.constant 0 : index
    %38 = vector.load %arg10[%c0_25, %c0_26] : memref<16x32xf32, #tpu.memory_space<vmem>>, vector<16x32xf32>
    tpu.vector_store %arg10[%c0_25, %c0_26], %37 {strides = array<i32>} : memref<16x32xf32, #tpu.memory_space<vmem>>, vector<16x32xf32>,
    return
  }
}

module attributes {stable_mosaic.version = 11 : i64} {
  func.func @_pair_kernel(%arg0: memref<128x25xf32, #tpu.memory_space<vmem>>, %arg1: memref<128x25xf32, #tpu.memory_space<vmem>>, %arg2: memref<128x25xf32, #tpu.memory_space<vmem>>, %arg3: memref<128x16xf32, #tpu.memory_space<vmem>>, %arg4: memref<128x16xf32, #tpu.memory_space<vmem>>, %arg5: memref<128x26xf32, #tpu.memory_space<vmem>>, %arg6: memref<128x1xf32, #tpu.memory_space<vmem>>, %arg7: memref<128x1xf32, #tpu.memory_space<vmem>>, %arg8: memref<25x16xf32, #tpu.memory_space<vmem>>, %arg9: memref<1x16xf32, #tpu.memory_space<vmem>>, %arg10: memref<16x16xf32, #tpu.memory_space<vmem>>, %arg11: memref<1x16xf32, #tpu.memory_space<vmem>>, %arg12: memref<16x16xf32, #tpu.memory_space<vmem>>, %arg13: memref<16x16xf32, #tpu.memory_space<vmem>>, %arg14: memref<16x16xf32, #tpu.memory_space<vmem>>, %arg15: memref<26x16xf32, #tpu.memory_space<vmem>>, %arg16: memref<1x16xf32, #tpu.memory_space<vmem>>, %arg17: memref<16x16xf32, #tpu.memory_space<vmem>>, %arg18: memref<1x16xf32, #tpu.memory_space<vmem>>, %arg19: memref<16x16xf32, #tpu.memory_space<vmem>>, %arg20: memref<1x16xf32, #tpu.memory_space<vmem>>, %arg21: memref<128x16xf32, #tpu.memory_space<vmem>>) attributes {dimension_semantics = [], scalar_prefetch = 0 : i64, scratch_operands = 0 : i64, tpu.core_type = #tpu.core_type<tc>} {
    %c0 = arith.constant 0 : index
    %c0_0 = arith.constant 0 : index
    %0 = vector.load %arg1[%c0, %c0_0] : memref<128x25xf32, #tpu.memory_space<vmem>>, vector<128x25xf32>
    %cst = arith.constant 0.000000e+00 : f32
    %1 = vector.broadcast %cst : f32 to vector<128x25xf32>
    %2 = arith.subf %1, %0 : vector<128x25xf32>
    %c0_1 = arith.constant 0 : index
    %c0_2 = arith.constant 0 : index
    %3 = vector.load %arg0[%c0_1, %c0_2] : memref<128x25xf32, #tpu.memory_space<vmem>>, vector<128x25xf32>
    %4 = arith.mulf %2, %3 : vector<128x25xf32>
    %5 = math.exp %4 : vector<128x25xf32>
    %c0_3 = arith.constant 0 : index
    %c0_4 = arith.constant 0 : index
    %6 = vector.load %arg2[%c0_3, %c0_4] : memref<128x25xf32, #tpu.memory_space<vmem>>, vector<128x25xf32>
    %7 = arith.mulf %5, %6 : vector<128x25xf32>
    %c0_5 = arith.constant 0 : index
    %c0_6 = arith.constant 0 : index
    %8 = vector.load %arg8[%c0_5, %c0_6] : memref<25x16xf32, #tpu.memory_space<vmem>>, vector<25x16xf32>
    %9 = arith.truncf %7 : vector<128x25xf32> to vector<128x25xbf16>
    %10 = arith.truncf %8 : vector<25x16xf32> to vector<25x16xbf16>
    %cst_7 = arith.constant dense<0.000000e+00> : vector<128x16xf32>
    %11 = tpu.matmul %9, %10, %cst_7 {dimension_numbers = #tpu.dot_dimension_numbers<[1], [0], [0], [1], [0, 0, 1, 1], [], []>} : vector<128x25xbf16>, vector<25x16xbf16>, vector<128x16xf32> -> vector<128x16xf32>
    %c0_8 = arith.constant 0 : index
    %c0_9 = arith.constant 0 : index
    %12 = vector.load %arg9[%c0_8, %c0_9] : memref<1x16xf32, #tpu.memory_space<vmem>>, vector<1x16xf32>
    %13 = vector.broadcast %12 : vector<1x16xf32> to vector<128x16xf32>
    %14 = arith.addf %11, %13 : vector<128x16xf32>
    %cst_10 = arith.constant 0.000000e+00 : f32
    %15 = vector.broadcast %cst_10 : f32 to vector<128x16xf32>
    %16 = arith.maximumf %14, %15 : vector<128x16xf32>
    %c0_11 = arith.constant 0 : index
    %c0_12 = arith.constant 0 : index
    %17 = vector.load %arg10[%c0_11, %c0_12] : memref<16x16xf32, #tpu.memory_space<vmem>>, vector<16x16xf32>
    %18 = arith.truncf %16 : vector<128x16xf32> to vector<128x16xbf16>
    %19 = arith.truncf %17 : vector<16x16xf32> to vector<16x16xbf16>
    %cst_13 = arith.constant dense<0.000000e+00> : vector<128x16xf32>
    %20 = tpu.matmul %18, %19, %cst_13 {dimension_numbers = #tpu.dot_dimension_numbers<[1], [0], [0], [1], [0, 0, 1, 1], [], []>} : vector<128x16xbf16>, vector<16x16xbf16>, vector<128x16xf32> -> vector<128x16xf32>
    %c0_14 = arith.constant 0 : index
    %c0_15 = arith.constant 0 : index
    %21 = vector.load %arg11[%c0_14, %c0_15] : memref<1x16xf32, #tpu.memory_space<vmem>>, vector<1x16xf32>
    %22 = vector.broadcast %21 : vector<1x16xf32> to vector<128x16xf32>
    %23 = arith.addf %20, %22 : vector<128x16xf32>
    %cst_16 = arith.constant 0.000000e+00 : f32
    %24 = vector.broadcast %cst_16 : f32 to vector<128x16xf32>
    %25 = arith.maximumf %23, %24 : vector<128x16xf32>
    %c0_17 = arith.constant 0 : index
    %c0_18 = arith.constant 0 : index
    %26 = vector.load %arg6[%c0_17, %c0_18] : memref<128x1xf32, #tpu.memory_space<vmem>>, vector<128x1xf32>
    %27 = vector.broadcast %26 : vector<128x1xf32> to vector<128x16xf32>
    %28 = arith.mulf %25, %27 : vector<128x16xf32>
    %c0_19 = arith.constant 0 : index
    %c0_20 = arith.constant 0 : index
    %29 = vector.load %arg5[%c0_19, %c0_20] : memref<128x26xf32, #tpu.memory_space<vmem>>, vector<128x26xf32>
    %30 = vector.broadcast %26 : vector<128x1xf32> to vector<128x26xf32>
    %31 = arith.mulf %29, %30 : vector<128x26xf32>
    %c0_21 = arith.constant 0 : index
    %c0_22 = arith.constant 0 : index
    %32 = vector.load %arg3[%c0_21, %c0_22] : memref<128x16xf32, #tpu.memory_space<vmem>>, vector<128x16xf32>
    %c0_23 = arith.constant 0 : index
    %c0_24 = arith.constant 0 : index
    %33 = vector.load %arg12[%c0_23, %c0_24] : memref<16x16xf32, #tpu.memory_space<vmem>>, vector<16x16xf32>
    %34 = arith.truncf %32 : vector<128x16xf32> to vector<128x16xbf16>
    %35 = arith.truncf %33 : vector<16x16xf32> to vector<16x16xbf16>
    %cst_25 = arith.constant dense<0.000000e+00> : vector<128x16xf32>
    %36 = tpu.matmul %34, %35, %cst_25 {dimension_numbers = #tpu.dot_dimension_numbers<[1], [0], [0], [1], [0, 0, 1, 1], [], []>} : vector<128x16xbf16>, vector<16x16xbf16>, vector<128x16xf32> -> vector<128x16xf32>
    %c0_26 = arith.constant 0 : index
    %c0_27 = arith.constant 0 : index
    %37 = vector.load %arg4[%c0_26, %c0_27] : memref<128x16xf32, #tpu.memory_space<vmem>>, vector<128x16xf32>
    %c0_28 = arith.constant 0 : index
    %c0_29 = arith.constant 0 : index
    %38 = vector.load %arg13[%c0_28, %c0_29] : memref<16x16xf32, #tpu.memory_space<vmem>>, vector<16x16xf32>
    %39 = arith.truncf %37 : vector<128x16xf32> to vector<128x16xbf16>
    %40 = arith.truncf %38 : vector<16x16xf32> to vector<16x16xbf16>
    %cst_30 = arith.constant dense<0.000000e+00> : vector<128x16xf32>
    %41 = tpu.matmul %39, %40, %cst_30 {dimension_numbers = #tpu.dot_dimension_numbers<[1], [0], [0], [1], [0, 0, 1, 1], [], []>} : vector<128x16xbf16>, vector<16x16xbf16>, vector<128x16xf32> -> vector<128x16xf32>
    %42 = arith.addf %36, %41 : vector<128x16xf32>
    %c0_31 = arith.constant 0 : index
    %c0_32 = arith.constant 0 : index
    %43 = vector.load %arg14[%c0_31, %c0_32] : memref<16x16xf32, #tpu.memory_space<vmem>>, vector<16x16xf32>
    %44 = arith.truncf %28 : vector<128x16xf32> to vector<128x16xbf16>
    %45 = arith.truncf %43 : vector<16x16xf32> to vector<16x16xbf16>
    %cst_33 = arith.constant dense<0.000000e+00> : vector<128x16xf32>
    %46 = tpu.matmul %44, %45, %cst_33 {dimension_numbers = #tpu.dot_dimension_numbers<[1], [0], [0], [1], [0, 0, 1, 1], [], []>} : vector<128x16xbf16>, vector<16x16xbf16>, vector<128x16xf32> -> vector<128x16xf32>
    %47 = arith.addf %42, %46 : vector<128x16xf32>
    %c0_34 = arith.constant 0 : index
    %c0_35 = arith.constant 0 : index
    %48 = vector.load %arg15[%c0_34, %c0_35] : memref<26x16xf32, #tpu.memory_space<vmem>>, vector<26x16xf32>
    %49 = arith.truncf %31 : vector<128x26xf32> to vector<128x26xbf16>
    %50 = arith.truncf %48 : vector<26x16xf32> to vector<26x16xbf16>
    %cst_36 = arith.constant dense<0.000000e+00> : vector<128x16xf32>
    %51 = tpu.matmul %49, %50, %cst_36 {dimension_numbers = #tpu.dot_dimension_numbers<[1], [0], [0], [1], [0, 0, 1, 1], [], []>} : vector<128x26xbf16>, vector<26x16xbf16>, vector<128x16xf32> -> vector<128x16xf32>
    %52 = arith.addf %47, %51 : vector<128x16xf32>
    %c0_37 = arith.constant 0 : index
    %c0_38 = arith.constant 0 : index
    %53 = vector.load %arg16[%c0_37, %c0_38] : memref<1x16xf32, #tpu.memory_space<vmem>>, vector<1x16xf32>
    %54 = vector.broadcast %53 : vector<1x16xf32> to vector<128x16xf32>
    %55 = arith.addf %52, %54 : vector<128x16xf32>
    %cst_39 = arith.constant 0.000000e+00 : f32
    %56 = vector.broadcast %cst_39 : f32 to vector<128x16xf32>
    %57 = arith.maximumf %55, %56 : vector<128x16xf32>
    %c0_40 = arith.constant 0 : index
    %c0_41 = arith.constant 0 : index
    %58 = vector.load %arg17[%c0_40, %c0_41] : memref<16x16xf32, #tpu.memory_space<vmem>>, vector<16x16xf32>
    %59 = arith.truncf %57 : vector<128x16xf32> to vector<128x16xbf16>
    %60 = arith.truncf %58 : vector<16x16xf32> to vector<16x16xbf16>
    %cst_42 = arith.constant dense<0.000000e+00> : vector<128x16xf32>
    %61 = tpu.matmul %59, %60, %cst_42 {dimension_numbers = #tpu.dot_dimension_numbers<[1], [0], [0], [1], [0, 0, 1, 1], [], []>} : vector<128x16xbf16>, vector<16x16xbf16>, vector<128x16xf32> -> vector<128x16xf32>
    %c0_43 = arith.constant 0 : index
    %c0_44 = arith.constant 0 : index
    %62 = vector.load %arg18[%c0_43, %c0_44] : memref<1x16xf32, #tpu.memory_space<vmem>>, vector<1x16xf32>
    %63 = vector.broadcast %62 : vector<1x16xf32> to vector<128x16xf32>
    %64 = arith.addf %61, %63 : vector<128x16xf32>
    %cst_45 = arith.constant 0.000000e+00 : f32
    %65 = vector.broadcast %cst_45 : f32 to vector<128x16xf32>
    %66 = arith.maximumf %64, %65 : vector<128x16xf32>
    %c0_46 = arith.constant 0 : index
    %c0_47 = arith.constant 0 : index
    %67 = vector.load %arg19[%c0_46, %c0_47] : memref<16x16xf32, #tpu.memory_space<vmem>>, vector<16x16xf32>
    %68 = arith.truncf %66 : vector<128x16xf32> to vector<128x16xbf16>
    %69 = arith.truncf %67 : vector<16x16xf32> to vector<16x16xbf16>
    %cst_48 = arith.constant dense<0.000000e+00> : vector<128x16xf32>
    %70 = tpu.matmul %68, %69, %cst_48 {dimension_numbers = #tpu.dot_dimension_numbers<[1], [0], [0], [1], [0, 0, 1, 1], [], []>} : vector<128x16xbf16>, vector<16x16xbf16>, vector<128x16xf32> -> vector<128x16xf32>
    %c0_49 = arith.constant 0 : index
    %c0_50 = arith.constant 0 : index
    %71 = vector.load %arg20[%c0_49, %c0_50] : memref<1x16xf32, #tpu.memory_space<vmem>>, vector<1x16xf32>
    %72 = vector.broadcast %71 : vector<1x16xf32> to vector<128x16xf32>
    %73 = arith.addf %70, %72 : vector<128x16xf32>
    %c0_51 = arith.constant 0 : index
    %c0_52 = arith.constant 0 : index
    %74 = vector.load %arg7[%c0_51, %c0_52] : memref<128x1xf32, #tpu.memory_space<vmem>>, vector<128x1xf32>
    %75 = vector.broadcast %74 : vector<128x1xf32> to vector<128x16xf32>
    %76 = arith.mulf %73, %75 : vector<128x16xf32>
    %c0_53 = arith.constant 0 : index
    %c0_54 = arith.constant 0 : index
    %77 = vector.load %arg21[%c0_53, %c0_54] : memref<128x16xf32, #tpu.memory_space<vmem>>, vector<128x16xf32>
    tpu.vector_store %arg21[%c0_53, %c0_54], %76 {strides = array<i32>} : memref<128x16xf32, #tpu.memory_space<vmem>>, vector<128x16xf32>,
    return
  }
}

module attributes {stable_mosaic.version = 11 : i64} {
  func.func @_eps_kernel(%arg0: memref<16x32xf32, #tpu.memory_space<vmem>>, %arg1: memref<16x32xf32, #tpu.memory_space<vmem>>, %arg2: memref<16x16xf32, #tpu.memory_space<vmem>>, %arg3: memref<16x96xf32, #tpu.memory_space<vmem>>, %arg4: memref<32x32xf32, #tpu.memory_space<vmem>>, %arg5: memref<32x32xf32, #tpu.memory_space<vmem>>, %arg6: memref<16x32xf32, #tpu.memory_space<vmem>>, %arg7: memref<1x32xf32, #tpu.memory_space<vmem>>, %arg8: memref<32x32xf32, #tpu.memory_space<vmem>>, %arg9: memref<1x32xf32, #tpu.memory_space<vmem>>, %arg10: memref<32x96xf32, #tpu.memory_space<vmem>>, %arg11: memref<96x96xf32, #tpu.memory_space<vmem>>, %arg12: memref<1x96xf32, #tpu.memory_space<vmem>>, %arg13: memref<96x128xf32, #tpu.memory_space<vmem>>, %arg14: memref<1x128xf32, #tpu.memory_space<vmem>>, %arg15: memref<16x128xf32, #tpu.memory_space<vmem>>) attributes {dimension_semantics = [], scalar_prefetch = 0 : i64, scratch_operands = 0 : i64, tpu.core_type = #tpu.core_type<tc>} {
    %c0 = arith.constant 0 : index
    %c0_0 = arith.constant 0 : index
    %0 = vector.load %arg0[%c0, %c0_0] : memref<16x32xf32, #tpu.memory_space<vmem>>, vector<16x32xf32>
    %c0_1 = arith.constant 0 : index
    %c0_2 = arith.constant 0 : index
    %1 = vector.load %arg4[%c0_1, %c0_2] : memref<32x32xf32, #tpu.memory_space<vmem>>, vector<32x32xf32>
    %2 = arith.truncf %0 : vector<16x32xf32> to vector<16x32xbf16>
    %3 = arith.truncf %1 : vector<32x32xf32> to vector<32x32xbf16>
    %cst = arith.constant dense<0.000000e+00> : vector<16x32xf32>
    %4 = tpu.matmul %2, %3, %cst {dimension_numbers = #tpu.dot_dimension_numbers<[1], [0], [0], [1], [0, 0, 1, 1], [], []>} : vector<16x32xbf16>, vector<32x32xbf16>, vector<16x32xf32> -> vector<16x32xf32>
    %c0_3 = arith.constant 0 : index
    %c0_4 = arith.constant 0 : index
    %5 = vector.load %arg1[%c0_3, %c0_4] : memref<16x32xf32, #tpu.memory_space<vmem>>, vector<16x32xf32>
    %c0_5 = arith.constant 0 : index
    %c0_6 = arith.constant 0 : index
    %6 = vector.load %arg5[%c0_5, %c0_6] : memref<32x32xf32, #tpu.memory_space<vmem>>, vector<32x32xf32>
    %7 = arith.truncf %5 : vector<16x32xf32> to vector<16x32xbf16>
    %8 = arith.truncf %6 : vector<32x32xf32> to vector<32x32xbf16>
    %cst_7 = arith.constant dense<0.000000e+00> : vector<16x32xf32>
    %9 = tpu.matmul %7, %8, %cst_7 {dimension_numbers = #tpu.dot_dimension_numbers<[1], [0], [0], [1], [0, 0, 1, 1], [], []>} : vector<16x32xbf16>, vector<32x32xbf16>, vector<16x32xf32> -> vector<16x32xf32>
    %10 = arith.addf %4, %9 : vector<16x32xf32>
    %c0_8 = arith.constant 0 : index
    %c0_9 = arith.constant 0 : index
    %11 = vector.load %arg2[%c0_8, %c0_9] : memref<16x16xf32, #tpu.memory_space<vmem>>, vector<16x16xf32>
    %c0_10 = arith.constant 0 : index
    %c0_11 = arith.constant 0 : index
    %12 = vector.load %arg6[%c0_10, %c0_11] : memref<16x32xf32, #tpu.memory_space<vmem>>, vector<16x32xf32>
    %13 = arith.truncf %11 : vector<16x16xf32> to vector<16x16xbf16>
    %14 = arith.truncf %12 : vector<16x32xf32> to vector<16x32xbf16>
    %cst_12 = arith.constant dense<0.000000e+00> : vector<16x32xf32>
    %15 = tpu.matmul %13, %14, %cst_12 {dimension_numbers = #tpu.dot_dimension_numbers<[1], [0], [0], [1], [0, 0, 1, 1], [], []>} : vector<16x16xbf16>, vector<16x32xbf16>, vector<16x32xf32> -> vector<16x32xf32>
    %16 = arith.addf %10, %15 : vector<16x32xf32>
    %c0_13 = arith.constant 0 : index
    %c0_14 = arith.constant 0 : index
    %17 = vector.load %arg7[%c0_13, %c0_14] : memref<1x32xf32, #tpu.memory_space<vmem>>, vector<1x32xf32>
    %18 = vector.broadcast %17 : vector<1x32xf32> to vector<16x32xf32>
    %19 = arith.addf %16, %18 : vector<16x32xf32>
    %cst_15 = arith.constant 0.000000e+00 : f32
    %20 = vector.broadcast %cst_15 : f32 to vector<16x32xf32>
    %21 = arith.maximumf %19, %20 : vector<16x32xf32>
    %c0_16 = arith.constant 0 : index
    %c0_17 = arith.constant 0 : index
    %22 = vector.load %arg8[%c0_16, %c0_17] : memref<32x32xf32, #tpu.memory_space<vmem>>, vector<32x32xf32>
    %23 = arith.truncf %21 : vector<16x32xf32> to vector<16x32xbf16>
    %24 = arith.truncf %22 : vector<32x32xf32> to vector<32x32xbf16>
    %cst_18 = arith.constant dense<0.000000e+00> : vector<16x32xf32>
    %25 = tpu.matmul %23, %24, %cst_18 {dimension_numbers = #tpu.dot_dimension_numbers<[1], [0], [0], [1], [0, 0, 1, 1], [], []>} : vector<16x32xbf16>, vector<32x32xbf16>, vector<16x32xf32> -> vector<16x32xf32>
    %c0_19 = arith.constant 0 : index
    %c0_20 = arith.constant 0 : index
    %26 = vector.load %arg9[%c0_19, %c0_20] : memref<1x32xf32, #tpu.memory_space<vmem>>, vector<1x32xf32>
    %27 = vector.broadcast %26 : vector<1x32xf32> to vector<16x32xf32>
    %28 = arith.addf %25, %27 : vector<16x32xf32>
    %c0_21 = arith.constant 0 : index
    %c0_22 = arith.constant 0 : index
    %29 = vector.load %arg10[%c0_21, %c0_22] : memref<32x96xf32, #tpu.memory_space<vmem>>, vector<32x96xf32>
    %30 = arith.truncf %28 : vector<16x32xf32> to vector<16x32xbf16>
    %31 = arith.truncf %29 : vector<32x96xf32> to vector<32x96xbf16>
    %cst_23 = arith.constant dense<0.000000e+00> : vector<16x96xf32>
    %32 = tpu.matmul %30, %31, %cst_23 {dimension_numbers = #tpu.dot_dimension_numbers<[1], [0], [0], [1], [0, 0, 1, 1], [], []>} : vector<16x32xbf16>, vector<32x96xbf16>, vector<16x96xf32> -> vector<16x96xf32>
    %c0_24 = arith.constant 0 : index
    %c0_25 = arith.constant 0 : index
    %33 = vector.load %arg3[%c0_24, %c0_25] : memref<16x96xf32, #tpu.memory_space<vmem>>, vector<16x96xf32>
    %34 = arith.addf %32, %33 : vector<16x96xf32>
    %cst_26 = arith.constant 0.000000e+00 : f32
    %35 = vector.broadcast %cst_26 : f32 to vector<16x96xf32>
    %36 = arith.maximumf %34, %35 : vector<16x96xf32>
    %c0_27 = arith.constant 0 : index
    %c0_28 = arith.constant 0 : index
    %37 = vector.load %arg11[%c0_27, %c0_28] : memref<96x96xf32, #tpu.memory_space<vmem>>, vector<96x96xf32>
    %38 = arith.truncf %36 : vector<16x96xf32> to vector<16x96xbf16>
    %39 = arith.truncf %37 : vector<96x96xf32> to vector<96x96xbf16>
    %cst_29 = arith.constant dense<0.000000e+00> : vector<16x96xf32>
    %40 = tpu.matmul %38, %39, %cst_29 {dimension_numbers = #tpu.dot_dimension_numbers<[1], [0], [0], [1], [0, 0, 1, 1], [], []>} : vector<16x96xbf16>, vector<96x96xbf16>, vector<16x96xf32> -> vector<16x96xf32>
    %c0_30 = arith.constant 0 : index
    %c0_31 = arith.constant 0 : index
    %41 = vector.load %arg12[%c0_30, %c0_31] : memref<1x96xf32, #tpu.memory_space<vmem>>, vector<1x96xf32>
    %42 = vector.broadcast %41 : vector<1x96xf32> to vector<16x96xf32>
    %43 = arith.addf %40, %42 : vector<16x96xf32>
    %cst_32 = arith.constant 0.000000e+00 : f32
    %44 = vector.broadcast %cst_32 : f32 to vector<16x96xf32>
    %45 = arith.maximumf %43, %44 : vector<16x96xf32>
    %c0_33 = arith.constant 0 : index
    %c0_34 = arith.constant 0 : index
    %46 = vector.load %arg13[%c0_33, %c0_34] : memref<96x128xf32, #tpu.memory_space<vmem>>, vector<96x128xf32>
    %47 = arith.truncf %45 : vector<16x96xf32> to vector<16x96xbf16>
    %48 = arith.truncf %46 : vector<96x128xf32> to vector<96x128xbf16>
    %cst_35 = arith.constant dense<0.000000e+00> : vector<16x128xf32>
    %49 = tpu.matmul %47, %48, %cst_35 {dimension_numbers = #tpu.dot_dimension_numbers<[1], [0], [0], [1], [0, 0, 1, 1], [], []>} : vector<16x96xbf16>, vector<96x128xbf16>, vector<16x128xf32> -> vector<16x128xf32>
    %c0_36 = arith.constant 0 : index
    %c0_37 = arith.constant 0 : index
    %50 = vector.load %arg14[%c0_36, %c0_37] : memref<1x128xf32, #tpu.memory_space<vmem>>, vector<1x128xf32>
    %51 = vector.broadcast %50 : vector<1x128xf32> to vector<16x128xf32>
    %52 = arith.addf %49, %51 : vector<16x128xf32>
    %53 = tpu.iota {dimensions = array<i32: 1>} : vector<16x128xi32>
    %c6_i32 = arith.constant 6 : i32
    %54 = vector.broadcast %c6_i32 : i32 to vector<16x128xi32>
    %55 = arith.cmpi sge, %53, %54 : vector<16x128xi32>
    %c26_i32 = arith.constant 26 : i32
    %56 = vector.broadcast %c26_i32 : i32 to vector<16x128xi32>
    %57 = arith.cmpi slt, %53, %56 : vector<16x128xi32>
    %58 = arith.andi %55, %57 : vector<16x128xi1>
    %cst_38 = arith.constant -1.000000e+30 : f32
    %59 = vector.broadcast %cst_38 : f32 to vector<16x128xf32>
    %60 = arith.select %58, %52, %59 : vector<16x128xi1>, vector<16x128xf32>
    %cst_39 = arith.constant dense<0xFF800000> : vector<16xf32>
    %61 = vector.multi_reduction <maximumf>, %60, %cst_39 [1] : vector<16x128xf32> to vector<16xf32>
    %62 = vector.shape_cast %61 : vector<16xf32> to vector<16x1xf32>
    %63 = vector.broadcast %62 : vector<16x1xf32> to vector<16x128xf32>
    %64 = arith.subf %60, %63 : vector<16x128xf32>
    %65 = math.exp %64 : vector<16x128xf32>
    %cst_40 = arith.constant dense<0.000000e+00> : vector<16xf32>
    %66 = vector.multi_reduction <add>, %65, %cst_40 [1] : vector<16x128xf32> to vector<16xf32>
    %67 = vector.shape_cast %66 : vector<16xf32> to vector<16x1xf32>
    %68 = tpu.reciprocal %67 {approx = true} : vector<16x1xf32> -> vector<16x1xf32>
    %69 = vector.broadcast %68 : vector<16x1xf32> to vector<16x128xf32>
    %70 = arith.mulf %65, %69 : vector<16x128xf32>
    %71 = arith.select %58, %70, %52 : vector<16x128xi1>, vector<16x128xf32>
    %c0_41 = arith.constant 0 : index
    %c0_42 = arith.constant 0 : index
    %72 = vector.load %arg15[%c0_41, %c0_42] : memref<16x128xf32, #tpu.memory_space<vmem>>, vector<16x128xf32>
    tpu.vector_store %arg15[%c0_41, %c0_42], %71 {strides = array<i32>} : memref<16x128xf32, #tpu.memory_space<vmem>>, vector<16x128xf32>,
    return
  }
}

</mosaic_0001>

<llo_original>
// kernel: model_forward.3
$region0: #{model_forward.3}
  #allocation0 [shape = 'u32[]', space=smem, size = 0x4, offset = 0x4, fixed_abs, tag = 'smem constant byte address 0x4 - core index']
  #allocation1 [shape = 'u32[72,128]{1,0:T(1,128)}', space=vmem, size = 0x9000, scoped, tag = 'internal scratch']
  %s0 = inlined_call_operand.vmem [shape: f32[16,512], index: 0, kind: input, shape index: {}]
  %s1 = inlined_call_operand.vmem [shape: f32[16,1], index: 1, kind: input, shape index: {}]
  %s2 = inlined_call_operand.vmem [shape: f32[512,64], index: 2, kind: input, shape index: {}]
  %s3 = inlined_call_operand.vmem [shape: f32[1,64], index: 3, kind: input, shape index: {}]
  %s4 = inlined_call_operand.vmem [shape: f32[64,32], index: 4, kind: input, shape index: {}]
  %s5 = inlined_call_operand.vmem [shape: f32[1,32], index: 5, kind: input, shape index: {}]
  %s6 = inlined_call_operand.vmem [shape: f32[32,32], index: 6, kind: input, shape index: {}]
  %s7 = inlined_call_operand.vmem [shape: f32[1,32], index: 7, kind: input, shape index: {}]
  %s8 = inlined_call_operand.vmem [shape: f32[32,32], index: 8, kind: input, shape index: {}]
  %s9 = inlined_call_operand.vmem [shape: f32[1,32], index: 9, kind: input, shape index: {}]
  %s10 = inlined_call_operand.vmem [shape: f32[16,32], index: 10, kind: output, shape index: {}]
  %s11 = sld [smem:[#allocation0]]
  $region50: #{model_forward.3} parent=0
    _
  %s13 = ssub.s32 1, %s11
  %s14 = scalar_select 0, %s13, %s11
  // Predicated region
  $region2: #{model_forward.3} parent=0 // pred_check
    _
  $region3: #{model_forward.3} parent=0 // pred_check_branch
    %16 = sbr.rel (0) target = $region5
  $region4: #{model_forward.3} parent=0 // pred_region
    _
  $region5: #{model_forward.3} parent=0 // pred_fallthru
    _
  // Predicated region
  $region6: #{model_forward.3} parent=0 // pred_check
    _
  $region7: #{model_forward.3} parent=0 // pred_check_branch
    %18 = sbr.rel (0) target = $region9
  $region8: #{model_forward.3} parent=0 // pred_region
    _
  $region9: #{model_forward.3} parent=0 // pred_fallthru
    _
  // Predicated region
  $region10: #{model_forward.3} parent=0 // pred_check
    _
  $region11: #{model_forward.3} parent=0 // pred_check_branch
    %20 = sbr.rel (0) target = $region13
  $region12: #{model_forward.3} parent=0 // pred_region
    _
  $region13: #{model_forward.3} parent=0 // pred_fallthru
    _
  // Predicated region
  $region14: #{model_forward.3} parent=0 // pred_check
    _
  $region15: #{model_forward.3} parent=0 // pred_check_branch
    %22 = sbr.rel (0) target = $region17
  $region16: #{model_forward.3} parent=0 // pred_region
    _
  $region17: #{model_forward.3} parent=0 // pred_fallthru
    _
  // Predicated region
  $region18: #{model_forward.3} parent=0 // pred_check
    _
  $region19: #{model_forward.3} parent=0 // pred_check_branch
    %24 = sbr.rel (0) target = $region21
  $region20: #{model_forward.3} parent=0 // pred_region
    _
  $region21: #{model_forward.3} parent=0 // pred_fallthru
    _
  // Predicated region
  $region22: #{model_forward.3} parent=0 // pred_check
    _
  $region23: #{model_forward.3} parent=0 // pred_check_branch
    %26 = sbr.rel (0) target = $region25
  $region24: #{model_forward.3} parent=0 // pred_region
    _
  $region25: #{model_forward.3} parent=0 // pred_fallthru
    _
  // Predicated region
  $region26: #{model_forward.3} parent=0 // pred_check
    _
  $region27: #{model_forward.3} parent=0 // pred_check_branch
    %28 = sbr.rel (0) target = $region29
  $region28: #{model_forward.3} parent=0 // pred_region
    _
  $region29: #{model_forward.3} parent=0 // pred_fallthru
    _
  // Predicated region
  $region30: #{model_forward.3} parent=0 // pred_check
    _
  $region31: #{model_forward.3} parent=0 // pred_check_branch
    %30 = sbr.rel (0) target = $region33
  $region32: #{model_forward.3} parent=0 // pred_region
    _
  $region33: #{model_forward.3} parent=0 // pred_fallthru
    _
  // Predicated region
  $region34: #{model_forward.3} parent=0 // pred_check
    _
  $region35: #{model_forward.3} parent=0 // pred_check_branch
    %32 = sbr.rel (0) target = $region37
  $region36: #{model_forward.3} parent=0 // pred_region
    _
  $region37: #{model_forward.3} parent=0 // pred_fallthru
    _
  // Predicated region
  $region38: #{model_forward.3} parent=0 // pred_check
    _
  $region39: #{model_forward.3} parent=0 // pred_check_branch
    %34 = sbr.rel (0) target = $region41
  $region40: #{model_forward.3} parent=0 // pred_region
    _
  $region41: #{model_forward.3} parent=0 // pred_fallthru
    _
  %v36 = vld [vmem:[%s0] sm:$0xff]
  %v37 = vld [vmem:[%s0 + $0x8] sm:$0xff]
  %v38 = vld [vmem:[%s0 + $0x10] sm:$0xff]
  %v39 = vld [vmem:[%s0 + $0x18] sm:$0xff]
  %v40 = vld [vmem:[%s0 + $0x20] sm:$0xff]
  %v41 = vld [vmem:[%s0 + $0x28] sm:$0xff]
  %v42 = vld [vmem:[%s0 + $0x30] sm:$0xff]
  %v43 = vld [vmem:[%s0 + $0x38] sm:$0xff]
  %v44 = vld [vmem:[%s2] sm:$0xff]
  %v45 = vld [vmem:[%s2 + $0x8] sm:$0xff]
  %v46 = vld [vmem:[%s2 + $0x10] sm:$0xff]
  %v47 = vld [vmem:[%s2 + $0x18] sm:$0xff]
  %v48 = vld [vmem:[%s2 + $0x20] sm:$0xff]
  %v49 = vld [vmem:[%s2 + $0x28] sm:$0xff]
  %v50 = vld [vmem:[%s2 + $0x30] sm:$0xff]
  %v51 = vld [vmem:[%s2 + $0x38] sm:$0xff]
  %v52 = vld [vmem:[%s2 + $0x40] sm:$0xff]
  %v53 = vld [vmem:[%s2 + $0x48] sm:$0xff]
  %v54 = vld [vmem:[%s2 + $0x50] sm:$0xff]
  %v55 = vld [vmem:[%s2 + $0x58] sm:$0xff]
  %v56 = vld [vmem:[%s2 + $0x60] sm:$0xff]
  %v57 = vld [vmem:[%s2 + $0x68] sm:$0xff]
  %v58 = vld [vmem:[%s2 + $0x70] sm:$0xff]
  %v59 = vld [vmem:[%s2 + $0x78] sm:$0xff]
  %v60 = vld [vmem:[%s2 + $0x80] sm:$0xff]
  %v61 = vld [vmem:[%s2 + $0x88] sm:$0xff]
  %v62 = vld [vmem:[%s2 + $0x90] sm:$0xff]
  %v63 = vld [vmem:[%s2 + $0x98] sm:$0xff]
  %v64 = vld [vmem:[%s2 + $0xa0] sm:$0xff]
  %v65 = vld [vmem:[%s2 + $0xa8] sm:$0xff]
  %v66 = vld [vmem:[%s2 + $0xb0] sm:$0xff]
  %v67 = vld [vmem:[%s2 + $0xb8] sm:$0xff]
  %v68 = vld [vmem:[%s2 + $0xc0] sm:$0xff]
  %v69 = vld [vmem:[%s2 + $0xc8] sm:$0xff]
  %v70 = vld [vmem:[%s2 + $0xd0] sm:$0xff]
  %v71 = vld [vmem:[%s2 + $0xd8] sm:$0xff]
  %v72 = vld [vmem:[%s2 + $0xe0] sm:$0xff]
  %v73 = vld [vmem:[%s2 + $0xe8] sm:$0xff]
  %v74 = vld [vmem:[%s2 + $0xf0] sm:$0xff]
  %v75 = vld [vmem:[%s2 + $0xf8] sm:$0xff]
  %v76 = vld [vmem:[%s2 + $0x100] sm:$0xff]
  %v77 = vld [vmem:[%s2 + $0x108] sm:$0xff]
  %v78 = vld [vmem:[%s2 + $0x110] sm:$0xff]
  %v79 = vld [vmem:[%s2 + $0x118] sm:$0xff]
  %v80 = vld [vmem:[%s2 + $0x120] sm:$0xff]
  %v81 = vld [vmem:[%s2 + $0x128] sm:$0xff]
  %v82 = vld [vmem:[%s2 + $0x130] sm:$0xff]
  %v83 = vld [vmem:[%s2 + $0x138] sm:$0xff]
  %v84 = vld [vmem:[%s2 + $0x140] sm:$0xff]
  %v85 = vld [vmem:[%s2 + $0x148] sm:$0xff]
  %v86 = vld [vmem:[%s2 + $0x150] sm:$0xff]
  %v87 = vld [vmem:[%s2 + $0x158] sm:$0xff]
  %v88 = vld [vmem:[%s2 + $0x160] sm:$0xff]
  %v89 = vld [vmem:[%s2 + $0x168] sm:$0xff]
  %v90 = vld [vmem:[%s2 + $0x170] sm:$0xff]
  %v91 = vld [vmem:[%s2 + $0x178] sm:$0xff]
  %v92 = vld [vmem:[%s2 + $0x180] sm:$0xff]
  %v93 = vld [vmem:[%s2 + $0x188] sm:$0xff]
  %v94 = vld [vmem:[%s2 + $0x190] sm:$0xff]
  %v95 = vld [vmem:[%s2 + $0x198] sm:$0xff]
  %v96 = vld [vmem:[%s2 + $0x1a0] sm:$0xff]
  %v97 = vld [vmem:[%s2 + $0x1a8] sm:$0xff]
  %v98 = vld [vmem:[%s2 + $0x1b0] sm:$0xff]
  %v99 = vld [vmem:[%s2 + $0x1b8] sm:$0xff]
  %v100 = vld [vmem:[%s2 + $0x1c0] sm:$0xff]
  %v101 = vld [vmem:[%s2 + $0x1c8] sm:$0xff]
  %v102 = vld [vmem:[%s2 + $0x1d0] sm:$0xff]
  %v103 = vld [vmem:[%s2 + $0x1d8] sm:$0xff]
  %v104 = vld [vmem:[%s2 + $0x1e0] sm:$0xff]
  %v105 = vld [vmem:[%s2 + $0x1e8] sm:$0xff]
  %v106 = vld [vmem:[%s2 + $0x1f0] sm:$0xff]
  %v107 = vld [vmem:[%s2 + $0x1f8] sm:$0xff]
  %v108 = vpack.c.bf16 %v40, %v36
  %v109 = vpack.c.bf16 %v41, %v37
  %v110 = vpack.c.bf16 %v42, %v38
  %v111 = vpack.c.bf16 %v43, %v39
  %v112 = vpack.c.bf16 %v45, %v44
  %v113 = vpack.c.bf16 %v47, %v46
  %v114 = vpack.c.bf16 %v49, %v48
  %v115 = vpack.c.bf16 %v51, %v50
  %v116 = vpack.c.bf16 %v53, %v52
  %v117 = vpack.c.bf16 %v55, %v54
  %v118 = vpack.c.bf16 %v57, %v56
  %v119 = vpack.c.bf16 %v59, %v58
  %v120 = vpack.c.bf16 %v61, %v60
  %v121 = vpack.c.bf16 %v63, %v62
  %v122 = vpack.c.bf16 %v65, %v64
  %v123 = vpack.c.bf16 %v67, %v66
  %v124 = vpack.c.bf16 %v69, %v68
  %v125 = vpack.c.bf16 %v71, %v70
  %v126 = vpack.c.bf16 %v73, %v72
  %v127 = vpack.c.bf16 %v75, %v74
  %v128 = vpack.c.bf16 %v77, %v76
  %v129 = vpack.c.bf16 %v79, %v78
  %v130 = vpack.c.bf16 %v81, %v80
  %v131 = vpack.c.bf16 %v83, %v82
  %v132 = vpack.c.bf16 %v85, %v84
  %v133 = vpack.c.bf16 %v87, %v86
  %v134 = vpack.c.bf16 %v89, %v88
  %v135 = vpack.c.bf16 %v91, %v90
  %v136 = vpack.c.bf16 %v93, %v92
  %v137 = vpack.c.bf16 %v95, %v94
  %v138 = vpack.c.bf16 %v97, %v96
  %v139 = vpack.c.bf16 %v99, %v98
  %v140 = vpack.c.bf16 %v101, %v100
  %v141 = vpack.c.bf16 %v103, %v102
  %v142 = vpack.c.bf16 %v105, %v104
  %v143 = vpack.c.bf16 %v107, %v106
  %v144 = vld [vmem:[%s3] sm:$0x1]
  %v146 = vperm.slane %v144, 0
  %148 = vmatpush.bf16.msra.mxu0 %v119
  %149 = vmatpush.bf16.msra.mxu0 %v118
  %150 = vmatpush.bf16.msra.mxu0 %v117
  %151 = vmatpush.bf16.msra.mxu0 %v116
  %152 = vmatpush.bf16.msra.mxu0 %v115
  %153 = vmatpush.bf16.msra.mxu0 %v114
  %154 = vmatpush.bf16.msra.mxu0 %v113
  %155 = vmatpush.bf16.msra.mxu0 %v112
  %156 = vmatmul.bf16.gmra.mxu0 %v108
  %v157 = vpop.f32.mrf.mxu0
  %v158 = vadd.f32 %v146, %v157
  %v159 = vpop.f32.mrf.mxu0
  %v160 = vadd.f32 %v146, %v159
  %161 = vdwg.mxu0
  %162 = vmatpush.bf16.msra.mxu0 %v127
  %163 = vmatpush.bf16.msra.mxu0 %v126
  %164 = vmatpush.bf16.msra.mxu0 %v125
  %165 = vmatpush.bf16.msra.mxu0 %v124
  %166 = vmatpush.bf16.msra.mxu0 %v123
  %167 = vmatpush.bf16.msra.mxu0 %v122
  %168 = vmatpush.bf16.msra.mxu0 %v121
  %169 = vmatpush.bf16.msra.mxu0 %v120
  %170 = vmatmul.bf16.gmra.mxu0 %v109
  %v171 = vpop.f32.mrf.mxu0
  %v172 = vadd.f32 %v158, %v171
  %v173 = vpop.f32.mrf.mxu0
  %v174 = vadd.f32 %v160, %v173
  %175 = vdwg.mxu0
  %176 = vmatpush.bf16.msra.mxu0 %v135
  %177 = vmatpush.bf16.msra.mxu0 %v134
  %178 = vmatpush.bf16.msra.mxu0 %v133
  %179 = vmatpush.bf16.msra.mxu0 %v132
  %180 = vmatpush.bf16.msra.mxu0 %v131
  %181 = vmatpush.bf16.msra.mxu0 %v130
  %182 = vmatpush.bf16.msra.mxu0 %v129
  %183 = vmatpush.bf16.msra.mxu0 %v128
  %184 = vmatmul.bf16.gmra.mxu0 %v110
  %v185 = vpop.f32.mrf.mxu0
  %v186 = vadd.f32 %v172, %v185
  %v187 = vpop.f32.mrf.mxu0
  %v188 = vadd.f32 %v174, %v187
  %189 = vdwg.mxu0
  %190 = vmatpush.bf16.msra.mxu0 %v143
  %191 = vmatpush.bf16.msra.mxu0 %v142
  %192 = vmatpush.bf16.msra.mxu0 %v141
  %193 = vmatpush.bf16.msra.mxu0 %v140
  %194 = vmatpush.bf16.msra.mxu0 %v139
  %195 = vmatpush.bf16.msra.mxu0 %v138
  %196 = vmatpush.bf16.msra.mxu0 %v137
  %197 = vmatpush.bf16.msra.mxu0 %v136
  %198 = vmatmul.bf16.gmra.mxu0 %v111
  %v199 = vpop.f32.mrf.mxu0
  %v200 = vadd.f32 %v186, %v199
  %v201 = vpop.f32.mrf.mxu0
  %v202 = vadd.f32 %v188, %v201
  %203 = vdwg.mxu0
  %v204 = vmax.f32 %v200, 0.0
  %v205 = vmax.f32 %v202, 0.0
  %v206 = vld [vmem:[%s4] sm:$0xff]
  %v207 = vld [vmem:[%s4 + $0x8] sm:$0xff]
  %v208 = vld [vmem:[%s4 + $0x10] sm:$0xff]
  %v209 = vld [vmem:[%s4 + $0x18] sm:$0xff]
  %v210 = vld [vmem:[%s4 + $0x20] sm:$0xff]
  %v211 = vld [vmem:[%s4 + $0x28] sm:$0xff]
  %v212 = vld [vmem:[%s4 + $0x30] sm:$0xff]
  %v213 = vld [vmem:[%s4 + $0x38] sm:$0xff]
  %v214 = vpack.c.bf16 %v205, %v204
  %v215 = vpack.c.bf16 %v207, %v206
  %v216 = vpack.c.bf16 %v209, %v208
  %v217 = vpack.c.bf16 %v211, %v210
  %v218 = vpack.c.bf16 %v213, %v212
  %v219 = vld [vmem:[%s5] sm:$0x1]
  %v221 = vperm.slane %v219, 0
  %vm223 = vcmask 523264
  %v225 = vsel %vm223, %v214, 0
  %227 = vmatpush.bf16.msra.mxu0 0
  %228 = vmatpush.bf16.msra.mxu0 0
  %229 = vmatpush.bf16.msra.mxu0 0
  %230 = vmatpush.bf16.msra.mxu0 0
  %231 = vmatpush.bf16.msra.mxu0 %v218
  %232 = vmatpush.bf16.msra.mxu0 %v217
  %233 = vmatpush.bf16.msra.mxu0 %v216
  %234 = vmatpush.bf16.msra.mxu0 %v215
  %235 = vmatmul.bf16.gmra.mxu0 %v225
  %v236 = vpop.f32.mrf.mxu0
  %v237 = vadd.f32 %v221, %v236
  %v238 = vpop.f32.mrf.mxu0
  %v239 = vadd.f32 %v221, %v238
  %240 = vdwg.mxu0
  %v241 = vmax.f32 %v237, 0.0
  %v242 = vmax.f32 %v239, 0.0
  %v243 = vld [vmem:[%s6] sm:$0xff]
  %v244 = vld [vmem:[%s6 + $0x8] sm:$0xff]
  %v245 = vld [vmem:[%s6 + $0x10] sm:$0xff]
  %v246 = vld [vmem:[%s6 + $0x18] sm:$0xff]
  %v247 = vpack.c.bf16 %v242, %v241
  %v248 = vpack.c.bf16 %v244, %v243
  %v249 = vpack.c.bf16 %v246, %v245
  %v250 = vld [vmem:[%s7] sm:$0x1]
  %v252 = vperm.slane %v250, 0
  %vm254 = vcmask 261120
  %v256 = vsel %vm254, %v247, 0
  %258 = vmatpush.bf16.msra.mxu0 0
  %259 = vmatpush.bf16.msra.mxu0 0
  %260 = vmatpush.bf16.msra.mxu0 0
  %261 = vmatpush.bf16.msra.mxu0 0
  %262 = vmatpush.bf16.msra.mxu0 0
  %263 = vmatpush.bf16.msra.mxu0 0
  %264 = vmatpush.bf16.msra.mxu0 %v249
  %265 = vmatpush.bf16.msra.mxu0 %v248
  %266 = vmatmul.bf16.gmra.mxu0 %v256
  %v267 = vpop.f32.mrf.mxu0
  %v268 = vadd.f32 %v252, %v267
  %v269 = vpop.f32.mrf.mxu0
  %v270 = vadd.f32 %v252, %v269
  %271 = vdwg.mxu0
  %v272 = vmax.f32 %v268, 0.0
  %v273 = vmax.f32 %v270, 0.0
  %v274 = vld [vmem:[%s8] sm:$0xff]
  %v275 = vld [vmem:[%s8 + $0x8] sm:$0xff]
  %v276 = vld [vmem:[%s8 + $0x10] sm:$0xff]
  %v277 = vld [vmem:[%s8 + $0x18] sm:$0xff]
  %v278 = vpack.c.bf16 %v273, %v272
  %v279 = vpack.c.bf16 %v275, %v274
  %v280 = vpack.c.bf16 %v277, %v276
  %v281 = vld [vmem:[%s9] sm:$0x1]
  %v283 = vperm.slane %v281, 0
  %v286 = vsel %vm254, %v278, 0
  %288 = vmatpush.bf16.msra.mxu0 0
  %289 = vmatpush.bf16.msra.mxu0 0
  %290 = vmatpush.bf16.msra.mxu0 0
  %291 = vmatpush.bf16.msra.mxu0 0
  %292 = vmatpush.bf16.msra.mxu0 0
  %293 = vmatpush.bf16.msra.mxu0 0
  %294 = vmatpush.bf16.msra.mxu0 %v280
  %295 = vmatpush.bf16.msra.mxu0 %v279
  %296 = vmatmul.bf16.gmra.mxu0 %v286
  %v297 = vpop.f32.mrf.mxu0
  %v298 = vadd.f32 %v283, %v297
  %v299 = vpop.f32.mrf.mxu0
  %v300 = vadd.f32 %v283, %v299
  %301 = vdwg.mxu0
  %v302 = vld [vmem:[%s1] sm:$0xff]
  %v303 = vld [vmem:[%s1 + $0x8] sm:$0xff]
  %305 = vset.pattern.permute.xlu0 0
  %306 = vperm.xlu0 %305, %v302
  %v307 = vpop.permute.xlu0 %306
  %310 = vset.pattern.permute.xlu0 0
  %311 = vperm.xlu0 %310, %v303
  %v312 = vpop.permute.xlu0 %311
  %v314 = vmul.f32 %v298, %v307
  %v315 = vmul.f32 %v300, %v312
  %316 = vst.msk [vmem:[%s10] sm:$0xff] %vm254, %v314
  %317 = vst.msk [vmem:[%s10 + $0x8] sm:$0xff] %vm254, %v315
  // Predicated region
  $region42: #{model_forward.3} parent=0 // pred_check
    _
  $region43: #{model_forward.3} parent=0 // pred_check_branch
    %319 = sbr.rel (0) target = $region45
  $region44: #{model_forward.3} parent=0 // pred_region
    _
  $region45: #{model_forward.3} parent=0 // pred_fallthru
    _
  // Predicated region
  $region46: #{model_forward.3} parent=0 // pred_check
    _
  $region47: #{model_forward.3} parent=0 // pred_check_branch
    %321 = sbr.rel (0) target = $region49
  $region48: #{model_forward.3} parent=0 // pred_region
    _
  $region49: #{model_forward.3} parent=0 // pred_fallthru
    _

// kernel: model_forward.4
$region0: #{model_forward.4}
  #allocation0 [shape = 'u32[]', space=smem, size = 0x4, offset = 0x4, fixed_abs, tag = 'smem constant byte address 0x4 - core index']
  #allocation1 [shape = 'u32[72,128]{1,0:T(1,128)}', space=vmem, size = 0x9000, scoped, tag = 'internal scratch']
  %s0 = inlined_call_operand.vmem [shape: f32[128,25], index: 0, kind: input, shape index: {}]
  %s1 = inlined_call_operand.vmem [shape: f32[128,25], index: 1, kind: input, shape index: {}]
  %s2 = inlined_call_operand.vmem [shape: f32[128,25], index: 2, kind: input, shape index: {}]
  %s3 = inlined_call_operand.vmem [shape: f32[128,16], index: 3, kind: input, shape index: {}]
  %s4 = inlined_call_operand.vmem [shape: f32[128,16], index: 4, kind: input, shape index: {}]
  %s5 = inlined_call_operand.vmem [shape: f32[128,26], index: 5, kind: input, shape index: {}]
  %s6 = inlined_call_operand.vmem [shape: f32[128,1], index: 6, kind: input, shape index: {}]
  %s7 = inlined_call_operand.vmem [shape: f32[128,1], index: 7, kind: input, shape index: {}]
  %s8 = inlined_call_operand.vmem [shape: f32[25,16], index: 8, kind: input, shape index: {}]
  %s9 = inlined_call_operand.vmem [shape: f32[1,16], index: 9, kind: input, shape index: {}]
  %s10 = inlined_call_operand.vmem [shape: f32[16,16], index: 10, kind: input, shape index: {}]
  %s11 = inlined_call_operand.vmem [shape: f32[1,16], index: 11, kind: input, shape index: {}]
  %s12 = inlined_call_operand.vmem [shape: f32[16,16], index: 12, kind: input, shape index: {}]
  %s13 = inlined_call_operand.vmem [shape: f32[16,16], index: 13, kind: input, shape index: {}]
  %s14 = inlined_call_operand.vmem [shape: f32[16,16], index: 14, kind: input, shape index: {}]
  %s15 = inlined_call_operand.vmem [shape: f32[26,16], index: 15, kind: input, shape index: {}]
  %s16 = inlined_call_operand.vmem [shape: f32[1,16], index: 16, kind: input, shape index: {}]
  %s17 = inlined_call_operand.vmem [shape: f32[16,16], index: 17, kind: input, shape index: {}]
  %s18 = inlined_call_operand.vmem [shape: f32[1,16], index: 18, kind: input, shape index: {}]
  %s19 = inlined_call_operand.vmem [shape: f32[16,16], index: 19, kind: input, shape index: {}]
  %s20 = inlined_call_operand.vmem [shape: f32[1,16], index: 20, kind: input, shape index: {}]
  %s21 = inlined_call_operand.vmem [shape: f32[128,16], index: 21, kind: output, shape index: {}]
  %s22 = sld [smem:[#allocation0]]
  $region94: #{model_forward.4} parent=0
    _
  %s24 = ssub.s32 1, %s22
  %s25 = scalar_select 0, %s24, %s22
  // Predicated region
  $region2: #{model_forward.4} parent=0 // pred_check
    _
  $region3: #{model_forward.4} parent=0 // pred_check_branch
    %27 = sbr.rel (0) target = $region5
  $region4: #{model_forward.4} parent=0 // pred_region
    _
  $region5: #{model_forward.4} parent=0 // pred_fallthru
    _
  // Predicated region
  $region6: #{model_forward.4} parent=0 // pred_check
    _
  $region7: #{model_forward.4} parent=0 // pred_check_branch
    %29 = sbr.rel (0) target = $region9
  $region8: #{model_forward.4} parent=0 // pred_region
    _
  $region9: #{model_forward.4} parent=0 // pred_fallthru
    _
  // Predicated region
  $region10: #{model_forward.4} parent=0 // pred_check
    _
  $region11: #{model_forward.4} parent=0 // pred_check_branch
    %31 = sbr.rel (0) target = $region13
  $region12: #{model_forward.4} parent=0 // pred_region
    _
  $region13: #{model_forward.4} parent=0 // pred_fallthru
    _
  // Predicated region
  $region14: #{model_forward.4} parent=0 // pred_check
    _
  $region15: #{model_forward.4} parent=0 // pred_check_branch
    %33 = sbr.rel (0) target = $region17
  $region16: #{model_forward.4} parent=0 // pred_region
    _
  $region17: #{model_forward.4} parent=0 // pred_fallthru
    _
  // Predicated region
  $region18: #{model_forward.4} parent=0 // pred_check
    _
  $region19: #{model_forward.4} parent=0 // pred_check_branch
    %35 = sbr.rel (0) target = $region21
  $region20: #{model_forward.4} parent=0 // pred_region
    _
  $region21: #{model_forward.4} parent=0 // pred_fallthru
    _
  // Predicated region
  $region22: #{model_forward.4} parent=0 // pred_check
    _
  $region23: #{model_forward.4} parent=0 // pred_check_branch
    %37 = sbr.rel (0) target = $region25
  $region24: #{model_forward.4} parent=0 // pred_region
    _
  $region25: #{model_forward.4} parent=0 // pred_fallthru
    _
  // Predicated region
  $region26: #{model_forward.4} parent=0 // pred_check
    _
  $region27: #{model_forward.4} parent=0 // pred_check_branch
    %39 = sbr.rel (0) target = $region29
  $region28: #{model_forward.4} parent=0 // pred_region
    _
  $region29: #{model_forward.4} parent=0 // pred_fallthru
    _
  // Predicated region
  $region30: #{model_forward.4} parent=0 // pred_check
    _
  $region31: #{model_forward.4} parent=0 // pred_check_branch
    %41 = sbr.rel (0) target = $region33
  $region32: #{model_forward.4} parent=0 // pred_region
    _
  $region33: #{model_forward.4} parent=0 // pred_fallthru
    _
  // Predicated region
  $region34: #{model_forward.4} parent=0 // pred_check
    _
  $region35: #{model_forward.4} parent=0 // pred_check_branch
    %43 = sbr.rel (0) target = $region37
  $region36: #{model_forward.4} parent=0 // pred_region
    _
  $region37: #{model_forward.4} parent=0 // pred_fallthru
    _
  // Predicated region
  $region38: #{model_forward.4} parent=0 // pred_check
    _
  $region39: #{model_forward.4} parent=0 // pred_check_branch
    %45 = sbr.rel (0) target = $region41
  $region40: #{model_forward.4} parent=0 // pred_region
    _
  $region41: #{model_forward.4} parent=0 // pred_fallthru
    _
  // Predicated region
  $region42: #{model_forward.4} parent=0 // pred_check
    _
  $region43: #{model_forward.4} parent=0 // pred_check_branch
    %47 = sbr.rel (0) target = $region45
  $region44: #{model_forward.4} parent=0 // pred_region
    _
  $region45: #{model_forward.4} parent=0 // pred_fallthru
    _
  // Predicated region
  $region46: #{model_forward.4} parent=0 // pred_check
    _
  $region47: #{model_forward.4} parent=0 // pred_check_branch
    %49 = sbr.rel (0) target = $region49
  $region48: #{model_forward.4} parent=0 // pred_region
    _
  $region49: #{model_forward.4} parent=0 // pred_fallthru
    _
  // Predicated region
  $region50: #{model_forward.4} parent=0 // pred_check
    _
  $region51: #{model_forward.4} parent=0 // pred_check_branch
    %51 = sbr.rel (0) target = $region53
  $region52: #{model_forward.4} parent=0 // pred_region
    _
  $region53: #{model_forward.4} parent=0 // pred_fallthru
    _
  // Predicated region
  $region54: #{model_forward.4} parent=0 // pred_check
    _
  $region55: #{model_forward.4} parent=0 // pred_check_branch
    %53 = sbr.rel (0) target = $region57
  $region56: #{model_forward.4} parent=0 // pred_region
    _
  $region57: #{model_forward.4} parent=0 // pred_fallthru
    _
  // Predicated region
  $region58: #{model_forward.4} parent=0 // pred_check
    _
  $region59: #{model_forward.4} parent=0 // pred_check_branch
    %55 = sbr.rel (0) target = $region61
  $region60: #{model_forward.4} parent=0 // pred_region
    _
  $region61: #{model_forward.4} parent=0 // pred_fallthru
    _
  // Predicated region
  $region62: #{model_forward.4} parent=0 // pred_check
    _
  $region63: #{model_forward.4} parent=0 // pred_check_branch
    %57 = sbr.rel (0) target = $region65
  $region64: #{model_forward.4} parent=0 // pred_region
    _
  $region65: #{model_forward.4} parent=0 // pred_fallthru
    _
  // Predicated region
  $region66: #{model_forward.4} parent=0 // pred_check
    _
  $region67: #{model_forward.4} parent=0 // pred_check_branch
    %59 = sbr.rel (0) target = $region69
  $region68: #{model_forward.4} parent=0 // pred_region
    _
  $region69: #{model_forward.4} parent=0 // pred_fallthru
    _
  // Predicated region
  $region70: #{model_forward.4} parent=0 // pred_check
    _
  $region71: #{model_forward.4} parent=0 // pred_check_branch
    %61 = sbr.rel (0) target = $region73
  $region72: #{model_forward.4} parent=0 // pred_region
    _
  $region73: #{model_forward.4} parent=0 // pred_fallthru
    _
  // Predicated region
  $region74: #{model_forward.4} parent=0 // pred_check
    _
  $region75: #{model_forward.4} parent=0 // pred_check_branch
    %63 = sbr.rel (0) target = $region77
  $region76: #{model_forward.4} parent=0 // pred_region
    _
  $region77: #{model_forward.4} parent=0 // pred_fallthru
    _
  // Predicated region
  $region78: #{model_forward.4} parent=0 // pred_check
    _
  $region79: #{model_forward.4} parent=0 // pred_check_branch
    %65 = sbr.rel (0) target = $region81
  $region80: #{model_forward.4} parent=0 // pred_region
    _
  $region81: #{model_forward.4} parent=0 // pred_fallthru
    _
  // Predicated region
  $region82: #{model_forward.4} parent=0 // pred_check
    _
  $region83: #{model_forward.4} parent=0 // pred_check_branch
    %67 = sbr.rel (0) target = $region85
  $region84: #{model_forward.4} parent=0 // pred_region
    _
  $region85: #{model_forward.4} parent=0 // pred_fallthru
    _
  %v69 = vld [vmem:[%s1] sm:$0xff]
  %v70 = vld [vmem:[%s1 + $0x8] sm:$0xff]
  %v71 = vld [vmem:[%s1 + $0x10] sm:$0xff]
  %v72 = vld [vmem:[%s1 + $0x18] sm:$0xff]
  %v73 = vld [vmem:[%s1 + $0x20] sm:$0xff]
  %v74 = vld [vmem:[%s1 + $0x28] sm:$0xff]
  %v75 = vld [vmem:[%s1 + $0x30] sm:$0xff]
  %v76 = vld [vmem:[%s1 + $0x38] sm:$0xff]
  %v77 = vld [vmem:[%s1 + $0x40] sm:$0xff]
  %v78 = vld [vmem:[%s1 + $0x48] sm:$0xff]
  %v79 = vld [vmem:[%s1 + $0x50] sm:$0xff]
  %v80 = vld [vmem:[%s1 + $0x58] sm:$0xff]
  %v81 = vld [vmem:[%s1 + $0x60] sm:$0xff]
  %v82 = vld [vmem:[%s1 + $0x68] sm:$0xff]
  %v83 = vld [vmem:[%s1 + $0x70] sm:$0xff]
  %v84 = vld [vmem:[%s1 + $0x78] sm:$0xff]
  %v85 = vsub.f32 0.0, %v69
  %v86 = vsub.f32 0.0, %v70
  %v87 = vsub.f32 0.0, %v71
  %v88 = vsub.f32 0.0, %v72
  %v89 = vsub.f32 0.0, %v73
  %v90 = vsub.f32 0.0, %v74
  %v91 = vsub.f32 0.0, %v75
  %v92 = vsub.f32 0.0, %v76
  %v93 = vsub.f32 0.0, %v77
  %v94 = vsub.f32 0.0, %v78
  %v95 = vsub.f32 0.0, %v79
  %v96 = vsub.f32 0.0, %v80
  %v97 = vsub.f32 0.0, %v81
  %v98 = vsub.f32 0.0, %v82
  %v99 = vsub.f32 0.0, %v83
  %v100 = vsub.f32 0.0, %v84
  %v101 = vld [vmem:[%s0] sm:$0xff]
  %v102 = vld [vmem:[%s0 + $0x8] sm:$0xff]
  %v103 = vld [vmem:[%s0 + $0x10] sm:$0xff]
  %v104 = vld [vmem:[%s0 + $0x18] sm:$0xff]
  %v105 = vld [vmem:[%s0 + $0x20] sm:$0xff]
  %v106 = vld [vmem:[%s0 + $0x28] sm:$0xff]
  %v107 = vld [vmem:[%s0 + $0x30] sm:$0xff]
  %v108 = vld [vmem:[%s0 + $0x38] sm:$0xff]
  %v109 = vld [vmem:[%s0 + $0x40] sm:$0xff]
  %v110 = vld [vmem:[%s0 + $0x48] sm:$0xff]
  %v111 = vld [vmem:[%s0 + $0x50] sm:$0xff]
  %v112 = vld [vmem:[%s0 + $0x58] sm:$0xff]
  %v113 = vld [vmem:[%s0 + $0x60] sm:$0xff]
  %v114 = vld [vmem:[%s0 + $0x68] sm:$0xff]
  %v115 = vld [vmem:[%s0 + $0x70] sm:$0xff]
  %v116 = vld [vmem:[%s0 + $0x78] sm:$0xff]
  %v117 = vmul.f32 %v85, %v101
  %v118 = vmul.f32 %v86, %v102
  %v119 = vmul.f32 %v87, %v103
  %v120 = vmul.f32 %v88, %v104
  %v121 = vmul.f32 %v89, %v105
  %v122 = vmul.f32 %v90, %v106
  %v123 = vmul.f32 %v91, %v107
  %v124 = vmul.f32 %v92, %v108
  %v125 = vmul.f32 %v93, %v109
  %v126 = vmul.f32 %v94, %v110
  %v127 = vmul.f32 %v95, %v111
  %v128 = vmul.f32 %v96, %v112
  %v129 = vmul.f32 %v97, %v113
  %v130 = vmul.f32 %v98, %v114
  %v131 = vmul.f32 %v99, %v115
  %v132 = vmul.f32 %v100, %v116
  %v133 = vmul.f32 %v117, 1.442695
  %v134 = vpow.pop %v133
  %v135 = vmul.f32 %v118, 1.442695
  %v136 = vpow.pop %v135
  %v137 = vmul.f32 %v119, 1.442695
  %v138 = vpow.pop %v137
  %v139 = vmul.f32 %v120, 1.442695
  %v140 = vpow.pop %v139
  %v141 = vmul.f32 %v121, 1.442695
  %v142 = vpow.pop %v141
  %v143 = vmul.f32 %v122, 1.442695
  %v144 = vpow.pop %v143
  %v145 = vmul.f32 %v123, 1.442695
  %v146 = vpow.pop %v145
  %v147 = vmul.f32 %v124, 1.442695
  %v148 = vpow.pop %v147
  %v149 = vmul.f32 %v125, 1.442695
  %v150 = vpow.pop %v149
  %v151 = vmul.f32 %v126, 1.442695
  %v152 = vpow.pop %v151
  %v153 = vmul.f32 %v127, 1.442695
  %v154 = vpow.pop %v153
  %v155 = vmul.f32 %v128, 1.442695
  %v156 = vpow.pop %v155
  %v157 = vmul.f32 %v129, 1.442695
  %v158 = vpow.pop %v157
  %v159 = vmul.f32 %v130, 1.442695
  %v160 = vpow.pop %v159
  %v161 = vmul.f32 %v131, 1.442695
  %v162 = vpow.pop %v161
  %v163 = vmul.f32 %v132, 1.442695
  %v164 = vpow.pop %v163
  %v165 = vld [vmem:[%s2] sm:$0xff]
  %v166 = vld [vmem:[%s2 + $0x8] sm:$0xff]
  %v167 = vld [vmem:[%s2 + $0x10] sm:$0xff]
  %v168 = vld [vmem:[%s2 + $0x18] sm:$0xff]
  %v169 = vld [vmem:[%s2 + $0x20] sm:$0xff]
  %v170 = vld [vmem:[%s2 + $0x28] sm:$0xff]
  %v171 = vld [vmem:[%s2 + $0x30] sm:$0xff]
  %v172 = vld [vmem:[%s2 + $0x38] sm:$0xff]
  %v173 = vld [vmem:[%s2 + $0x40] sm:$0xff]
  %v174 = vld [vmem:[%s2 + $0x48] sm:$0xff]
  %v175 = vld [vmem:[%s2 + $0x50] sm:$0xff]
  %v176 = vld [vmem:[%s2 + $0x58] sm:$0xff]
  %v177 = vld [vmem:[%s2 + $0x60] sm:$0xff]
  %v178 = vld [vmem:[%s2 + $0x68] sm:$0xff]
  %v179 = vld [vmem:[%s2 + $0x70] sm:$0xff]
  %v180 = vld [vmem:[%s2 + $0x78] sm:$0xff]
  %v181 = vmul.f32 %v134, %v165
  %v182 = vmul.f32 %v136, %v166
  %v183 = vmul.f32 %v138, %v167
  %v184 = vmul.f32 %v140, %v168
  %v185 = vmul.f32 %v142, %v169
  %v186 = vmul.f32 %v144, %v170
  %v187 = vmul.f32 %v146, %v171
  %v188 = vmul.f32 %v148, %v172
  %v189 = vmul.f32 %v150, %v173
  %v190 = vmul.f32 %v152, %v174
  %v191 = vmul.f32 %v154, %v175
  %v192 = vmul.f32 %v156, %v176
  %v193 = vmul.f32 %v158, %v177
  %v194 = vmul.f32 %v160, %v178
  %v195 = vmul.f32 %v162, %v179
  %v196 = vmul.f32 %v164, %v180
  %v197 = vld [vmem:[%s8] sm:$0xff]
  %v198 = vld [vmem:[%s8 + $0x8] sm:$0xff]
  %v199 = vld [vmem:[%s8 + $0x10] sm:$0xff]
  %v200 = vld [vmem:[%s8 + $0x18] sm:$0x1]
  %v201 = vpack.c.bf16 %v182, %v181
  %v202 = vpack.c.bf16 %v184, %v183
  %v203 = vpack.c.bf16 %v186, %v185
  %v204 = vpack.c.bf16 %v188, %v187
  %v205 = vpack.c.bf16 %v190, %v189
  %v206 = vpack.c.bf16 %v192, %v191
  %v207 = vpack.c.bf16 %v194, %v193
  %v208 = vpack.c.bf16 %v196, %v195
  %v209 = vpack.c.bf16 %v198, %v197
  %v210 = vpack.c.bf16 %v200, %v199
  %v211 = vld [vmem:[%s9] sm:$0x1]
  %v213 = vperm.slane %v211, 0
  %vm215 = vcmask 203776
  %v217 = vsel %vm215, %v201, 0
  %v220 = vsel %vm215, %v202, 0
  %v223 = vsel %vm215, %v203, 0
  %v226 = vsel %vm215, %v204, 0
  %v229 = vsel %vm215, %v205, 0
  %v232 = vsel %vm215, %v206, 0
  %v235 = vsel %vm215, %v207, 0
  %v238 = vsel %vm215, %v208, 0
  %vm240 = vcmask 1043456
  %vm241 = vcmask 1044480
  %v242 = vsel %vm240, 4294967295, 65535
  %v243 = vsel %vm241, %v242, 0
  %v245 = vand.u32 %v210, %v243
  %247 = vmatpush.bf16.msra.mxu0 0
  %248 = vmatpush.bf16.msra.mxu0 0
  %249 = vmatpush.bf16.msra.mxu0 0
  %250 = vmatpush.bf16.msra.mxu0 0
  %251 = vmatpush.bf16.msra.mxu0 0
  %252 = vmatpush.bf16.msra.mxu0 0
  %253 = vmatpush.bf16.msra.mxu0 %v245
  %254 = vmatpush.bf16.msra.mxu0 %v209
  %255 = vmatmul.bf16.gmra.mxu0 %v217
  %v256 = vpop.f32.mrf.mxu0
  %v257 = vadd.f32 %v213, %v256
  %v258 = vpop.f32.mrf.mxu0
  %v259 = vadd.f32 %v213, %v258
  %260 = vmatmul.bf16.gmra.mxu0 %v220
  %v261 = vpop.f32.mrf.mxu0
  %v262 = vadd.f32 %v213, %v261
  %v263 = vpop.f32.mrf.mxu0
  %v264 = vadd.f32 %v213, %v263
  %265 = vmatmul.bf16.gmra.mxu0 %v223
  %v266 = vpop.f32.mrf.mxu0
  %v267 = vadd.f32 %v213, %v266
  %v268 = vpop.f32.mrf.mxu0
  %v269 = vadd.f32 %v213, %v268
  %270 = vmatmul.bf16.gmra.mxu0 %v226
  %v271 = vpop.f32.mrf.mxu0
  %v272 = vadd.f32 %v213, %v271
  %v273 = vpop.f32.mrf.mxu0
  %v274 = vadd.f32 %v213, %v273
  %275 = vmatmul.bf16.gmra.mxu0 %v229
  %v276 = vpop.f32.mrf.mxu0
  %v277 = vadd.f32 %v213, %v276
  %v278 = vpop.f32.mrf.mxu0
  %v279 = vadd.f32 %v213, %v278
  %280 = vmatmul.bf16.gmra.mxu0 %v232
  %v281 = vpop.f32.mrf.mxu0
  %v282 = vadd.f32 %v213, %v281
  %v283 = vpop.f32.mrf.mxu0
  %v284 = vadd.f32 %v213, %v283
  %285 = vmatmul.bf16.gmra.mxu0 %v235
  %v286 = vpop.f32.mrf.mxu0
  %v287 = vadd.f32 %v213, %v286
  %v288 = vpop.f32.mrf.mxu0
  %v289 = vadd.f32 %v213, %v288
  %290 = vmatmul.bf16.gmra.mxu0 %v238
  %v291 = vpop.f32.mrf.mxu0
  %v292 = vadd.f32 %v213, %v291
  %v293 = vpop.f32.mrf.mxu0
  %v294 = vadd.f32 %v213, %v293
  %295 = vdwg.mxu0
  %v296 = vmax.f32 %v257, 0.0
  %v297 = vmax.f32 %v259, 0.0
  %v298 = vmax.f32 %v262, 0.0
  %v299 = vmax.f32 %v264, 0.0
  %v300 = vmax.f32 %v267, 0.0
  %v301 = vmax.f32 %v269, 0.0
  %v302 = vmax.f32 %v272, 0.0
  %v303 = vmax.f32 %v274, 0.0
  %v304 = vmax.f32 %v277, 0.0
  %v305 = vmax.f32 %v279, 0.0
  %v306 = vmax.f32 %v282, 0.0
  %v307 = vmax.f32 %v284, 0.0
  %v308 = vmax.f32 %v287, 0.0
  %v309 = vmax.f32 %v289, 0.0
  %v310 = vmax.f32 %v292, 0.0
  %v311 = vmax.f32 %v294, 0.0
  %v312 = vld [vmem:[%s10] sm:$0xff]
  %v313 = vld [vmem:[%s10 + $0x8] sm:$0xff]
  %v314 = vpack.c.bf16 %v297, %v296
  %v315 = vpack.c.bf16 %v299, %v298
  %v316 = vpack.c.bf16 %v301, %v300
  %v317 = vpack.c.bf16 %v303, %v302
  %v318 = vpack.c.bf16 %v305, %v304
  %v319 = vpack.c.bf16 %v307, %v306
  %v320 = vpack.c.bf16 %v309, %v308
  %v321 = vpack.c.bf16 %v311, %v310
  %v322 = vpack.c.bf16 %v313, %v312
  %v323 = vld [vmem:[%s11] sm:$0x1]
  %v325 = vperm.slane %v323, 0
  %vm327 = vcmask 130048
  %v329 = vsel %vm327, %v314, 0
  %v332 = vsel %vm327, %v315, 0
  %v335 = vsel %vm327, %v316, 0
  %v338 = vsel %vm327, %v317, 0
  %v341 = vsel %vm327, %v318, 0
  %v344 = vsel %vm327, %v319, 0
  %v347 = vsel %vm327, %v320, 0
  %v350 = vsel %vm327, %v321, 0
  %352 = vmatpush.bf16.msra.mxu0 0
  %353 = vmatpush.bf16.msra.mxu0 0
  %354 = vmatpush.bf16.msra.mxu0 0
  %355 = vmatpush.bf16.msra.mxu0 0
  %356 = vmatpush.bf16.msra.mxu0 0
  %357 = vmatpush.bf16.msra.mxu0 0
  %358 = vmatpush.bf16.msra.mxu0 0
  %359 = vmatpush.bf16.msra.mxu0 %v322
  %360 = vmatmul.bf16.gmra.mxu0 %v329
  %v361 = vpop.f32.mrf.mxu0
  %v362 = vadd.f32 %v325, %v361
  %v363 = vpop.f32.mrf.mxu0
  %v364 = vadd.f32 %v325, %v363
  %365 = vmatmul.bf16.gmra.mxu0 %v332
  %v366 = vpop.f32.mrf.mxu0
  %v367 = vadd.f32 %v325, %v366
  %v368 = vpop.f32.mrf.mxu0
  %v369 = vadd.f32 %v325, %v368
  %370 = vmatmul.bf16.gmra.mxu0 %v335
  %v371 = vpop.f32.mrf.mxu0
  %v372 = vadd.f32 %v325, %v371
  %v373 = vpop.f32.mrf.mxu0
  %v374 = vadd.f32 %v325, %v373
  %375 = vmatmul.bf16.gmra.mxu0 %v338
  %v376 = vpop.f32.mrf.mxu0
  %v377 = vadd.f32 %v325, %v376
  %v378 = vpop.f32.mrf.mxu0
  %v379 = vadd.f32 %v325, %v378
  %380 = vmatmul.bf16.gmra.mxu0 %v341
  %v381 = vpop.f32.mrf.mxu0
  %v382 = vadd.f32 %v325, %v381
  %v383 = vpop.f32.mrf.mxu0
  %v384 = vadd.f32 %v325, %v383
  %385 = vmatmul.bf16.gmra.mxu0 %v344
  %v386 = vpop.f32.mrf.mxu0
  %v387 = vadd.f32 %v325, %v386
  %v388 = vpop.f32.mrf.mxu0
  %v389 = vadd.f32 %v325, %v388
  %390 = vmatmul.bf16.gmra.mxu0 %v347
  %v391 = vpop.f32.mrf.mxu0
  %v392 = vadd.f32 %v325, %v391
  %v393 = vpop.f32.mrf.mxu0
  %v394 = vadd.f32 %v325, %v393
  %395 = vmatmul.bf16.gmra.mxu0 %v350
  %v396 = vpop.f32.mrf.mxu0
  %v397 = vadd.f32 %v325, %v396
  %v398 = vpop.f32.mrf.mxu0
  %v399 = vadd.f32 %v325, %v398
  %400 = vdwg.mxu0
  %v401 = vmax.f32 %v362, 0.0
  %v402 = vmax.f32 %v364, 0.0
  %v403 = vmax.f32 %v367, 0.0
  %v404 = vmax.f32 %v369, 0.0
  %v405 = vmax.f32 %v372, 0.0
  %v406 = vmax.f32 %v374, 0.0
  %v407 = vmax.f32 %v377, 0.0
  %v408 = vmax.f32 %v379, 0.0
  %v409 = vmax.f32 %v382, 0.0
  %v410 = vmax.f32 %v384, 0.0
  %v411 = vmax.f32 %v387, 0.0
  %v412 = vmax.f32 %v389, 0.0
  %v413 = vmax.f32 %v392, 0.0
  %v414 = vmax.f32 %v394, 0.0
  %v415 = vmax.f32 %v397, 0.0
  %v416 = vmax.f32 %v399, 0.0
  %v417 = vld [vmem:[%s6] sm:$0xff]
  %v418 = vld [vmem:[%s6 + $0x8] sm:$0xff]
  %v419 = vld [vmem:[%s6 + $0x10] sm:$0xff]
  %v420 = vld [vmem:[%s6 + $0x18] sm:$0xff]
  %v421 = vld [vmem:[%s6 + $0x20] sm:$0xff]
  %v422 = vld [vmem:[%s6 + $0x28] sm:$0xff]
  %v423 = vld [vmem:[%s6 + $0x30] sm:$0xff]
  %v424 = vld [vmem:[%s6 + $0x38] sm:$0xff]
  %v425 = vld [vmem:[%s6 + $0x40] sm:$0xff]
  %v426 = vld [vmem:[%s6 + $0x48] sm:$0xff]
  %v427 = vld [vmem:[%s6 + $0x50] sm:$0xff]
  %v428 = vld [vmem:[%s6 + $0x58] sm:$0xff]
  %v429 = vld [vmem:[%s6 + $0x60] sm:$0xff]
  %v430 = vld [vmem:[%s6 + $0x68] sm:$0xff]
  %v431 = vld [vmem:[%s6 + $0x70] sm:$0xff]
  %v432 = vld [vmem:[%s6 + $0x78] sm:$0xff]
  %434 = vset.pattern.permute.xlu0 0
  %435 = vperm.xlu0 %434, %v417
  %v436 = vpop.permute.xlu0 %435
  %439 = vset.pattern.permute.xlu0 0
  %440 = vperm.xlu0 %439, %v418
  %v441 = vpop.permute.xlu0 %440
  %444 = vset.pattern.permute.xlu0 0
  %445 = vperm.xlu0 %444, %v419
  %v446 = vpop.permute.xlu0 %445
  %449 = vset.pattern.permute.xlu0 0
  %450 = vperm.xlu0 %449, %v420
  %v451 = vpop.permute.xlu0 %450
  %454 = vset.pattern.permute.xlu0 0
  %455 = vperm.xlu0 %454, %v421
  %v456 = vpop.permute.xlu0 %455
  %459 = vset.pattern.permute.xlu0 0
  %460 = vperm.xlu0 %459, %v422
  %v461 = vpop.permute.xlu0 %460
  %464 = vset.pattern.permute.xlu0 0
  %465 = vperm.xlu0 %464, %v423
  %v466 = vpop.permute.xlu0 %465
  %469 = vset.pattern.permute.xlu0 0
  %470 = vperm.xlu0 %469, %v424
  %v471 = vpop.permute.xlu0 %470
  %474 = vset.pattern.permute.xlu0 0
  %475 = vperm.xlu0 %474, %v425
  %v476 = vpop.permute.xlu0 %475
  %479 = vset.pattern.permute.xlu0 0
  %480 = vperm.xlu0 %479, %v426
  %v481 = vpop.permute.xlu0 %480
  %484 = vset.pattern.permute.xlu0 0
  %485 = vperm.xlu0 %484, %v427
  %v486 = vpop.permute.xlu0 %485
  %489 = vset.pattern.permute.xlu0 0
  %490 = vperm.xlu0 %489, %v428
  %v491 = vpop.permute.xlu0 %490
  %494 = vset.pattern.permute.xlu0 0
  %495 = vperm.xlu0 %494, %v429
  %v496 = vpop.permute.xlu0 %495
  %499 = vset.pattern.permute.xlu0 0
  %500 = vperm.xlu0 %499, %v430
  %v501 = vpop.permute.xlu0 %500
  %504 = vset.pattern.permute.xlu0 0
  %505 = vperm.xlu0 %504, %v431
  %v506 = vpop.permute.xlu0 %505
  %509 = vset.pattern.permute.xlu0 0
  %510 = vperm.xlu0 %509, %v432
  %v511 = vpop.permute.xlu0 %510
  %v513 = vmul.f32 %v401, %v436
  %v514 = vmul.f32 %v402, %v441
  %v515 = vmul.f32 %v403, %v446
  %v516 = vmul.f32 %v404, %v451
  %v517 = vmul.f32 %v405, %v456
  %v518 = vmul.f32 %v406, %v461
  %v519 = vmul.f32 %v407, %v466
  %v520 = vmul.f32 %v408, %v471
  %v521 = vmul.f32 %v409, %v476
  %v522 = vmul.f32 %v410, %v481
  %v523 = vmul.f32 %v411, %v486
  %v524 = vmul.f32 %v412, %v491
  %v525 = vmul.f32 %v413, %v496
  %v526 = vmul.f32 %v414, %v501
  %v527 = vmul.f32 %v415, %v506
  %v528 = vmul.f32 %v416, %v511
  %v529 = vld [vmem:[%s5] sm:$0xff]
  %v530 = vld [vmem:[%s5 + $0x8] sm:$0xff]
  %v531 = vld [vmem:[%s5 + $0x10] sm:$0xff]
  %v532 = vld [vmem:[%s5 + $0x18] sm:$0xff]
  %v533 = vld [vmem:[%s5 + $0x20] sm:$0xff]
  %v534 = vld [vmem:[%s5 + $0x28] sm:$0xff]
  %v535 = vld [vmem:[%s5 + $0x30] sm:$0xff]
  %v536 = vld [vmem:[%s5 + $0x38] sm:$0xff]
  %v537 = vld [vmem:[%s5 + $0x40] sm:$0xff]
  %v538 = vld [vmem:[%s5 + $0x48] sm:$0xff]
  %v539 = vld [vmem:[%s5 + $0x50] sm:$0xff]
  %v540 = vld [vmem:[%s5 + $0x58] sm:$0xff]
  %v541 = vld [vmem:[%s5 + $0x60] sm:$0xff]
  %v542 = vld [vmem:[%s5 + $0x68] sm:$0xff]
  %v543 = vld [vmem:[%s5 + $0x70] sm:$0xff]
  %v544 = vld [vmem:[%s5 + $0x78] sm:$0xff]
  %v545 = vmul.f32 %v529, %v436
  %v546 = vmul.f32 %v530, %v441
  %v547 = vmul.f32 %v531, %v446
  %v548 = vmul.f32 %v532, %v451
  %v549 = vmul.f32 %v533, %v456
  %v550 = vmul.f32 %v534, %v461
  %v551 = vmul.f32 %v535, %v466
  %v552 = vmul.f32 %v536, %v471
  %v553 = vmul.f32 %v537, %v476
  %v554 = vmul.f32 %v538, %v481
  %v555 = vmul.f32 %v539, %v486
  %v556 = vmul.f32 %v540, %v491
  %v557 = vmul.f32 %v541, %v496
  %v558 = vmul.f32 %v542, %v501
  %v559 = vmul.f32 %v543, %v506
  %v560 = vmul.f32 %v544, %v511
  %v561 = vld [vmem:[%s3] sm:$0xff]
  %v562 = vld [vmem:[%s3 + $0x8] sm:$0xff]
  %v563 = vld [vmem:[%s3 + $0x10] sm:$0xff]
  %v564 = vld [vmem:[%s3 + $0x18] sm:$0xff]
  %v565 = vld [vmem:[%s3 + $0x20] sm:$0xff]
  %v566 = vld [vmem:[%s3 + $0x28] sm:$0xff]
  %v567 = vld [vmem:[%s3 + $0x30] sm:$0xff]
  %v568 = vld [vmem:[%s3 + $0x38] sm:$0xff]
  %v569 = vld [vmem:[%s3 + $0x40] sm:$0xff]
  %v570 = vld [vmem:[%s3 + $0x48] sm:$0xff]
  %v571 = vld [vmem:[%s3 + $0x50] sm:$0xff]
  %v572 = vld [vmem:[%s3 + $0x58] sm:$0xff]
  %v573 = vld [vmem:[%s3 + $0x60] sm:$0xff]
  %v574 = vld [vmem:[%s3 + $0x68] sm:$0xff]
  %v575 = vld [vmem:[%s3 + $0x70] sm:$0xff]
  %v576 = vld [vmem:[%s3 + $0x78] sm:$0xff]
  %v577 = vld [vmem:[%s12] sm:$0xff]
  %v578 = vld [vmem:[%s12 + $0x8] sm:$0xff]
  %v579 = vpack.c.bf16 %v562, %v561
  %v580 = vpack.c.bf16 %v564, %v563
  %v581 = vpack.c.bf16 %v566, %v565
  %v582 = vpack.c.bf16 %v568, %v567
  %v583 = vpack.c.bf16 %v570, %v569
  %v584 = vpack.c.bf16 %v572, %v571
  %v585 = vpack.c.bf16 %v574, %v573
  %v586 = vpack.c.bf16 %v576, %v575
  %v587 = vpack.c.bf16 %v578, %v577
  %v588 = vld [vmem:[%s4] sm:$0xff]
  %v589 = vld [vmem:[%s4 + $0x8] sm:$0xff]
  %v590 = vld [vmem:[%s4 + $0x10] sm:$0xff]
  %v591 = vld [vmem:[%s4 + $0x18] sm:$0xff]
  %v592 = vld [vmem:[%s4 + $0x20] sm:$0xff]
  %v593 = vld [vmem:[%s4 + $0x28] sm:$0xff]
  %v594 = vld [vmem:[%s4 + $0x30] sm:$0xff]
  %v595 = vld [vmem:[%s4 + $0x38] sm:$0xff]
  %v596 = vld [vmem:[%s4 + $0x40] sm:$0xff]
  %v597 = vld [vmem:[%s4 + $0x48] sm:$0xff]
  %v598 = vld [vmem:[%s4 + $0x50] sm:$0xff]
  %v599 = vld [vmem:[%s4 + $0x58] sm:$0xff]
  %v600 = vld [vmem:[%s4 + $0x60] sm:$0xff]
  %v601 = vld [vmem:[%s4 + $0x68] sm:$0xff]
  %v602 = vld [vmem:[%s4 + $0x70] sm:$0xff]
  %v603 = vld [vmem:[%s4 + $0x78] sm:$0xff]
  %v604 = vld [vmem:[%s13] sm:$0xff]
  %v605 = vld [vmem:[%s13 + $0x8] sm:$0xff]
  %v606 = vpack.c.bf16 %v589, %v588
  %v607 = vpack.c.bf16 %v591, %v590
  %v608 = vpack.c.bf16 %v593, %v592
  %v609 = vpack.c.bf16 %v595, %v594
  %v610 = vpack.c.bf16 %v597, %v596
  %v611 = vpack.c.bf16 %v599, %v598
  %v612 = vpack.c.bf16 %v601, %v600
  %v613 = vpack.c.bf16 %v603, %v602
  %v614 = vpack.c.bf16 %v605, %v604
  %v616 = vsel %vm327, %v606, 0
  %v619 = vsel %vm327, %v607, 0
  %v622 = vsel %vm327, %v608, 0
  %v625 = vsel %vm327, %v609, 0
  %v628 = vsel %vm327, %v610, 0
  %v631 = vsel %vm327, %v611, 0
  %v634 = vsel %vm327, %v612, 0
  %v637 = vsel %vm327, %v613, 0
  %639 = vmatpush.bf16.msra.mxu0 0
  %640 = vmatpush.bf16.msra.mxu0 0
  %641 = vmatpush.bf16.msra.mxu0 0
  %642 = vmatpush.bf16.msra.mxu0 0
  %643 = vmatpush.bf16.msra.mxu0 0
  %644 = vmatpush.bf16.msra.mxu0 0
  %645 = vmatpush.bf16.msra.mxu0 0
  %646 = vmatpush.bf16.msra.mxu0 %v614
  %647 = vmatmul.bf16.gmra.mxu0 %v616
  %v648 = vpop.f32.mrf.mxu0
  %v649 = vadd.f32 0.0, %v648
  %v650 = vpop.f32.mrf.mxu0
  %v651 = vadd.f32 0.0, %v650
  %652 = vmatmul.bf16.gmra.mxu0 %v619
  %v653 = vpop.f32.mrf.mxu0
  %v654 = vadd.f32 0.0, %v653
  %v655 = vpop.f32.mrf.mxu0
  %v656 = vadd.f32 0.0, %v655
  %657 = vmatmul.bf16.gmra.mxu0 %v622
  %v658 = vpop.f32.mrf.mxu0
  %v659 = vadd.f32 0.0, %v658
  %v660 = vpop.f32.mrf.mxu0
  %v661 = vadd.f32 0.0, %v660
  %662 = vmatmul.bf16.gmra.mxu0 %v625
  %v663 = vpop.f32.mrf.mxu0
  %v664 = vadd.f32 0.0, %v663
  %v665 = vpop.f32.mrf.mxu0
  %v666 = vadd.f32 0.0, %v665
  %667 = vmatmul.bf16.gmra.mxu0 %v628
  %v668 = vpop.f32.mrf.mxu0
  %v669 = vadd.f32 0.0, %v668
  %v670 = vpop.f32.mrf.mxu0
  %v671 = vadd.f32 0.0, %v670
  %672 = vmatmul.bf16.gmra.mxu0 %v631
  %v673 = vpop.f32.mrf.mxu0
  %v674 = vadd.f32 0.0, %v673
  %v675 = vpop.f32.mrf.mxu0
  %v676 = vadd.f32 0.0, %v675
  %677 = vmatmul.bf16.gmra.mxu0 %v634
  %v678 = vpop.f32.mrf.mxu0
  %v679 = vadd.f32 0.0, %v678
  %v680 = vpop.f32.mrf.mxu0
  %v681 = vadd.f32 0.0, %v680
  %682 = vmatmul.bf16.gmra.mxu0 %v637
  %v683 = vpop.f32.mrf.mxu0
  %v684 = vadd.f32 0.0, %v683
  %v685 = vpop.f32.mrf.mxu0
  %v686 = vadd.f32 0.0, %v685
  %687 = vdwg.mxu0
  %v689 = vsel %vm327, %v579, 0
  %v692 = vsel %vm327, %v580, 0
  %v695 = vsel %vm327, %v581, 0
  %v698 = vsel %vm327, %v582, 0
  %v701 = vsel %vm327, %v583, 0
  %v704 = vsel %vm327, %v584, 0
  %v707 = vsel %vm327, %v585, 0
  %v710 = vsel %vm327, %v586, 0
  %712 = vmatpush.bf16.msra.mxu0 0
  %713 = vmatpush.bf16.msra.mxu0 0
  %714 = vmatpush.bf16.msra.mxu0 0
  %715 = vmatpush.bf16.msra.mxu0 0
  %716 = vmatpush.bf16.msra.mxu0 0
  %717 = vmatpush.bf16.msra.mxu0 0
  %718 = vmatpush.bf16.msra.mxu0 0
  %719 = vmatpush.bf16.msra.mxu0 %v587
  %720 = vmatmul.bf16.gmra.mxu0 %v689
  %v721 = vpop.f32.mrf.mxu0
  %v722 = vadd.f32 %v649, %v721
  %v723 = vpop.f32.mrf.mxu0
  %v724 = vadd.f32 %v651, %v723
  %725 = vmatmul.bf16.gmra.mxu0 %v692
  %v726 = vpop.f32.mrf.mxu0
  %v727 = vadd.f32 %v654, %v726
  %v728 = vpop.f32.mrf.mxu0
  %v729 = vadd.f32 %v656, %v728
  %730 = vmatmul.bf16.gmra.mxu0 %v695
  %v731 = vpop.f32.mrf.mxu0
  %v732 = vadd.f32 %v659, %v731
  %v733 = vpop.f32.mrf.mxu0
  %v734 = vadd.f32 %v661, %v733
  %735 = vmatmul.bf16.gmra.mxu0 %v698
  %v736 = vpop.f32.mrf.mxu0
  %v737 = vadd.f32 %v664, %v736
  %v738 = vpop.f32.mrf.mxu0
  %v739 = vadd.f32 %v666, %v738
  %740 = vmatmul.bf16.gmra.mxu0 %v701
  %v741 = vpop.f32.mrf.mxu0
  %v742 = vadd.f32 %v669, %v741
  %v743 = vpop.f32.mrf.mxu0
  %v744 = vadd.f32 %v671, %v743
  %745 = vmatmul.bf16.gmra.mxu0 %v704
  %v746 = vpop.f32.mrf.mxu0
  %v747 = vadd.f32 %v674, %v746
  %v748 = vpop.f32.mrf.mxu0
  %v749 = vadd.f32 %v676, %v748
  %750 = vmatmul.bf16.gmra.mxu0 %v707
  %v751 = vpop.f32.mrf.mxu0
  %v752 = vadd.f32 %v679, %v751
  %v753 = vpop.f32.mrf.mxu0
  %v754 = vadd.f32 %v681, %v753
  %755 = vmatmul.bf16.gmra.mxu0 %v710
  %v756 = vpop.f32.mrf.mxu0
  %v757 = vadd.f32 %v684, %v756
  %v758 = vpop.f32.mrf.mxu0
  %v759 = vadd.f32 %v686, %v758
  %760 = vdwg.mxu0
  %v761 = vld [vmem:[%s14] sm:$0xff]
  %v762 = vld [vmem:[%s14 + $0x8] sm:$0xff]
  %v763 = vpack.c.bf16 %v514, %v513
  %v764 = vpack.c.bf16 %v516, %v515
  %v765 = vpack.c.bf16 %v518, %v517
  %v766 = vpack.c.bf16 %v520, %v519
  %v767 = vpack.c.bf16 %v522, %v521
  %v768 = vpack.c.bf16 %v524, %v523
  %v769 = vpack.c.bf16 %v526, %v525
  %v770 = vpack.c.bf16 %v528, %v527
  %v771 = vpack.c.bf16 %v762, %v761
  %v773 = vsel %vm327, %v763, 0
  %v776 = vsel %vm327, %v764, 0
  %v779 = vsel %vm327, %v765, 0
  %v782 = vsel %vm327, %v766, 0
  %v785 = vsel %vm327, %v767, 0
  %v788 = vsel %vm327, %v768, 0
  %v791 = vsel %vm327, %v769, 0
  %v794 = vsel %vm327, %v770, 0
  %796 = vmatpush.bf16.msra.mxu0 0
  %797 = vmatpush.bf16.msra.mxu0 0
  %798 = vmatpush.bf16.msra.mxu0 0
  %799 = vmatpush.bf16.msra.mxu0 0
  %800 = vmatpush.bf16.msra.mxu0 0
  %801 = vmatpush.bf16.msra.mxu0 0
  %802 = vmatpush.bf16.msra.mxu0 0
  %803 = vmatpush.bf16.msra.mxu0 %v771
  %804 = vmatmul.bf16.gmra.mxu0 %v773
  %v805 = vpop.f32.mrf.mxu0
  %v806 = vadd.f32 0.0, %v805
  %v807 = vpop.f32.mrf.mxu0
  %v808 = vadd.f32 0.0, %v807
  %809 = vmatmul.bf16.gmra.mxu0 %v776
  %v810 = vpop.f32.mrf.mxu0
  %v811 = vadd.f32 0.0, %v810
  %v812 = vpop.f32.mrf.mxu0
  %v813 = vadd.f32 0.0, %v812
  %814 = vmatmul.bf16.gmra.mxu0 %v779
  %v815 = vpop.f32.mrf.mxu0
  %v816 = vadd.f32 0.0, %v815
  %v817 = vpop.f32.mrf.mxu0
  %v818 = vadd.f32 0.0, %v817
  %819 = vmatmul.bf16.gmra.mxu0 %v782
  %v820 = vpop.f32.mrf.mxu0
  %v821 = vadd.f32 0.0, %v820
  %v822 = vpop.f32.mrf.mxu0
  %v823 = vadd.f32 0.0, %v822
  %824 = vmatmul.bf16.gmra.mxu0 %v785
  %v825 = vpop.f32.mrf.mxu0
  %v826 = vadd.f32 0.0, %v825
  %v827 = vpop.f32.mrf.mxu0
  %v828 = vadd.f32 0.0, %v827
  %829 = vmatmul.bf16.gmra.mxu0 %v788
  %v830 = vpop.f32.mrf.mxu0
  %v831 = vadd.f32 0.0, %v830
  %v832 = vpop.f32.mrf.mxu0
  %v833 = vadd.f32 0.0, %v832
  %834 = vmatmul.bf16.gmra.mxu0 %v791
  %v835 = vpop.f32.mrf.mxu0
  %v836 = vadd.f32 0.0, %v835
  %v837 = vpop.f32.mrf.mxu0
  %v838 = vadd.f32 0.0, %v837
  %839 = vmatmul.bf16.gmra.mxu0 %v794
  %v840 = vpop.f32.mrf.mxu0
  %v841 = vadd.f32 0.0, %v840
  %v842 = vpop.f32.mrf.mxu0
  %v843 = vadd.f32 0.0, %v842
  %844 = vdwg.mxu0
  %v845 = vadd.f32 %v722, %v806
  %v846 = vadd.f32 %v724, %v808
  %v847 = vadd.f32 %v727, %v811
  %v848 = vadd.f32 %v729, %v813
  %v849 = vadd.f32 %v732, %v816
  %v850 = vadd.f32 %v734, %v818
  %v851 = vadd.f32 %v737, %v821
  %v852 = vadd.f32 %v739, %v823
  %v853 = vadd.f32 %v742, %v826
  %v854 = vadd.f32 %v744, %v828
  %v855 = vadd.f32 %v747, %v831
  %v856 = vadd.f32 %v749, %v833
  %v857 = vadd.f32 %v752, %v836
  %v858 = vadd.f32 %v754, %v838
  %v859 = vadd.f32 %v757, %v841
  %v860 = vadd.f32 %v759, %v843
  %v861 = vld [vmem:[%s15] sm:$0xff]
  %v862 = vld [vmem:[%s15 + $0x8] sm:$0xff]
  %v863 = vld [vmem:[%s15 + $0x10] sm:$0xff]
  %v864 = vld [vmem:[%s15 + $0x18] sm:$0x3]
  %v865 = vpack.c.bf16 %v546, %v545
  %v866 = vpack.c.bf16 %v548, %v547
  %v867 = vpack.c.bf16 %v550, %v549
  %v868 = vpack.c.bf16 %v552, %v551
  %v869 = vpack.c.bf16 %v554, %v553
  %v870 = vpack.c.bf16 %v556, %v555
  %v871 = vpack.c.bf16 %v558, %v557
  %v872 = vpack.c.bf16 %v560, %v559
  %v873 = vpack.c.bf16 %v862, %v861
  %v874 = vpack.c.bf16 %v864, %v863
  %vm875 = vcmask 211968
  %v877 = vsel %vm875, %v865, 0
  %v880 = vsel %vm875, %v866, 0
  %v883 = vsel %vm875, %v867, 0
  %v886 = vsel %vm875, %v868, 0
  %v889 = vsel %vm875, %v869, 0
  %v892 = vsel %vm875, %v870, 0
  %v895 = vsel %vm875, %v871, 0
  %v898 = vsel %vm875, %v872, 0
  %v901 = vsel %vm241, %v874, 0
  %903 = vmatpush.bf16.msra.mxu0 0
  %904 = vmatpush.bf16.msra.mxu0 0
  %905 = vmatpush.bf16.msra.mxu0 0
  %906 = vmatpush.bf16.msra.mxu0 0
  %907 = vmatpush.bf16.msra.mxu0 0
  %908 = vmatpush.bf16.msra.mxu0 0
  %909 = vmatpush.bf16.msra.mxu0 %v901
  %910 = vmatpush.bf16.msra.mxu0 %v873
  %911 = vmatmul.bf16.gmra.mxu0 %v877
  %v912 = vpop.f32.mrf.mxu0
  %v913 = vadd.f32 0.0, %v912
  %v914 = vpop.f32.mrf.mxu0
  %v915 = vadd.f32 0.0, %v914
  %916 = vmatmul.bf16.gmra.mxu0 %v880
  %v917 = vpop.f32.mrf.mxu0
  %v918 = vadd.f32 0.0, %v917
  %v919 = vpop.f32.mrf.mxu0
  %v920 = vadd.f32 0.0, %v919
  %921 = vmatmul.bf16.gmra.mxu0 %v883
  %v922 = vpop.f32.mrf.mxu0
  %v923 = vadd.f32 0.0, %v922
  %v924 = vpop.f32.mrf.mxu0
  %v925 = vadd.f32 0.0, %v924
  %926 = vmatmul.bf16.gmra.mxu0 %v886
  %v927 = vpop.f32.mrf.mxu0
  %v928 = vadd.f32 0.0, %v927
  %v929 = vpop.f32.mrf.mxu0
  %v930 = vadd.f32 0.0, %v929
  %931 = vmatmul.bf16.gmra.mxu0 %v889
  %v932 = vpop.f32.mrf.mxu0
  %v933 = vadd.f32 0.0, %v932
  %v934 = vpop.f32.mrf.mxu0
  %v935 = vadd.f32 0.0, %v934
  %936 = vmatmul.bf16.gmra.mxu0 %v892
  %v937 = vpop.f32.mrf.mxu0
  %v938 = vadd.f32 0.0, %v937
  %v939 = vpop.f32.mrf.mxu0
  %v940 = vadd.f32 0.0, %v939
  %941 = vmatmul.bf16.gmra.mxu0 %v895
  %v942 = vpop.f32.mrf.mxu0
  %v943 = vadd.f32 0.0, %v942
  %v944 = vpop.f32.mrf.mxu0
  %v945 = vadd.f32 0.0, %v944
  %946 = vmatmul.bf16.gmra.mxu0 %v898
  %v947 = vpop.f32.mrf.mxu0
  %v948 = vadd.f32 0.0, %v947
  %v949 = vpop.f32.mrf.mxu0
  %v950 = vadd.f32 0.0, %v949
  %951 = vdwg.mxu0
  %v952 = vadd.f32 %v845, %v913
  %v953 = vadd.f32 %v846, %v915
  %v954 = vadd.f32 %v847, %v918
  %v955 = vadd.f32 %v848, %v920
  %v956 = vadd.f32 %v849, %v923
  %v957 = vadd.f32 %v850, %v925
  %v958 = vadd.f32 %v851, %v928
  %v959 = vadd.f32 %v852, %v930
  %v960 = vadd.f32 %v853, %v933
  %v961 = vadd.f32 %v854, %v935
  %v962 = vadd.f32 %v855, %v938
  %v963 = vadd.f32 %v856, %v940
  %v964 = vadd.f32 %v857, %v943
  %v965 = vadd.f32 %v858, %v945
  %v966 = vadd.f32 %v859, %v948
  %v967 = vadd.f32 %v860, %v950
  %v968 = vld [vmem:[%s16] sm:$0x1]
  %v970 = vperm.slane %v968, 0
  %v972 = vadd.f32 %v952, %v970
  %v973 = vadd.f32 %v953, %v970
  %v974 = vadd.f32 %v954, %v970
  %v975 = vadd.f32 %v955, %v970
  %v976 = vadd.f32 %v956, %v970
  %v977 = vadd.f32 %v957, %v970
  %v978 = vadd.f32 %v958, %v970
  %v979 = vadd.f32 %v959, %v970
  %v980 = vadd.f32 %v960, %v970
  %v981 = vadd.f32 %v961, %v970
  %v982 = vadd.f32 %v962, %v970
  %v983 = vadd.f32 %v963, %v970
  %v984 = vadd.f32 %v964, %v970
  %v985 = vadd.f32 %v965, %v970
  %v986 = vadd.f32 %v966, %v970
  %v987 = vadd.f32 %v967, %v970
  %v988 = vmax.f32 %v972, 0.0
  %v989 = vmax.f32 %v973, 0.0
  %v990 = vmax.f32 %v974, 0.0
  %v991 = vmax.f32 %v975, 0.0
  %v992 = vmax.f32 %v976, 0.0
  %v993 = vmax.f32 %v977, 0.0
  %v994 = vmax.f32 %v978, 0.0
  %v995 = vmax.f32 %v979, 0.0
  %v996 = vmax.f32 %v980, 0.0
  %v997 = vmax.f32 %v981, 0.0
  %v998 = vmax.f32 %v982, 0.0
  %v999 = vmax.f32 %v983, 0.0
  %v1000 = vmax.f32 %v984, 0.0
  %v1001 = vmax.f32 %v985, 0.0
  %v1002 = vmax.f32 %v986, 0.0
  %v1003 = vmax.f32 %v987, 0.0
  %v1004 = vld [vmem:[%s17] sm:$0xff]
  %v1005 = vld [vmem:[%s17 + $0x8] sm:$0xff]
  %v1006 = vpack.c.bf16 %v989, %v988
  %v1007 = vpack.c.bf16 %v991, %v990
  %v1008 = vpack.c.bf16 %v993, %v992
  %v1009 = vpack.c.bf16 %v995, %v994
  %v1010 = vpack.c.bf16 %v997, %v996
  %v1011 = vpack.c.bf16 %v999, %v998
  %v1012 = vpack.c.bf16 %v1001, %v1000
  %v1013 = vpack.c.bf16 %v1003, %v1002
  %v1014 = vpack.c.bf16 %v1005, %v1004
  %v1015 = vld [vmem:[%s18] sm:$0x1]
  %v1017 = vperm.slane %v1015, 0
  %v1020 = vsel %vm327, %v1006, 0
  %v1023 = vsel %vm327, %v1007, 0
  %v1026 = vsel %vm327, %v1008, 0
  %v1029 = vsel %vm327, %v1009, 0
  %v1032 = vsel %vm327, %v1010, 0
  %v1035 = vsel %vm327, %v1011, 0
  %v1038 = vsel %vm327, %v1012, 0
  %v1041 = vsel %vm327, %v1013, 0
  %1043 = vmatpush.bf16.msra.mxu0 0
  %1044 = vmatpush.bf16.msra.mxu0 0
  %1045 = vmatpush.bf16.msra.mxu0 0
  %1046 = vmatpush.bf16.msra.mxu0 0
  %1047 = vmatpush.bf16.msra.mxu0 0
  %1048 = vmatpush.bf16.msra.mxu0 0
  %1049 = vmatpush.bf16.msra.mxu0 0
  %1050 = vmatpush.bf16.msra.mxu0 %v1014
  %1051 = vmatmul.bf16.gmra.mxu0 %v1020
  %v1052 = vpop.f32.mrf.mxu0
  %v1053 = vadd.f32 %v1017, %v1052
  %v1054 = vpop.f32.mrf.mxu0
  %v1055 = vadd.f32 %v1017, %v1054
  %1056 = vmatmul.bf16.gmra.mxu0 %v1023
  %v1057 = vpop.f32.mrf.mxu0
  %v1058 = vadd.f32 %v1017, %v1057
  %v1059 = vpop.f32.mrf.mxu0
  %v1060 = vadd.f32 %v1017, %v1059
  %1061 = vmatmul.bf16.gmra.mxu0 %v1026
  %v1062 = vpop.f32.mrf.mxu0
  %v1063 = vadd.f32 %v1017, %v1062
  %v1064 = vpop.f32.mrf.mxu0
  %v1065 = vadd.f32 %v1017, %v1064
  %1066 = vmatmul.bf16.gmra.mxu0 %v1029
  %v1067 = vpop.f32.mrf.mxu0
  %v1068 = vadd.f32 %v1017, %v1067
  %v1069 = vpop.f32.mrf.mxu0
  %v1070 = vadd.f32 %v1017, %v1069
  %1071 = vmatmul.bf16.gmra.mxu0 %v1032
  %v1072 = vpop.f32.mrf.mxu0
  %v1073 = vadd.f32 %v1017, %v1072
  %v1074 = vpop.f32.mrf.mxu0
  %v1075 = vadd.f32 %v1017, %v1074
  %1076 = vmatmul.bf16.gmra.mxu0 %v1035
  %v1077 = vpop.f32.mrf.mxu0
  %v1078 = vadd.f32 %v1017, %v1077
  %v1079 = vpop.f32.mrf.mxu0
  %v1080 = vadd.f32 %v1017, %v1079
  %1081 = vmatmul.bf16.gmra.mxu0 %v1038
  %v1082 = vpop.f32.mrf.mxu0
  %v1083 = vadd.f32 %v1017, %v1082
  %v1084 = vpop.f32.mrf.mxu0
  %v1085 = vadd.f32 %v1017, %v1084
  %1086 = vmatmul.bf16.gmra.mxu0 %v1041
  %v1087 = vpop.f32.mrf.mxu0
  %v1088 = vadd.f32 %v1017, %v1087
  %v1089 = vpop.f32.mrf.mxu0
  %v1090 = vadd.f32 %v1017, %v1089
  %1091 = vdwg.mxu0
  %v1092 = vmax.f32 %v1053, 0.0
  %v1093 = vmax.f32 %v1055, 0.0
  %v1094 = vmax.f32 %v1058, 0.0
  %v1095 = vmax.f32 %v1060, 0.0
  %v1096 = vmax.f32 %v1063, 0.0
  %v1097 = vmax.f32 %v1065, 0.0
  %v1098 = vmax.f32 %v1068, 0.0
  %v1099 = vmax.f32 %v1070, 0.0
  %v1100 = vmax.f32 %v1073, 0.0
  %v1101 = vmax.f32 %v1075, 0.0
  %v1102 = vmax.f32 %v1078, 0.0
  %v1103 = vmax.f32 %v1080, 0.0
  %v1104 = vmax.f32 %v1083, 0.0
  %v1105 = vmax.f32 %v1085, 0.0
  %v1106 = vmax.f32 %v1088, 0.0
  %v1107 = vmax.f32 %v1090, 0.0
  %v1108 = vld [vmem:[%s19] sm:$0xff]
  %v1109 = vld [vmem:[%s19 + $0x8] sm:$0xff]
  %v1110 = vpack.c.bf16 %v1093, %v1092
  %v1111 = vpack.c.bf16 %v1095, %v1094
  %v1112 = vpack.c.bf16 %v1097, %v1096
  %v1113 = vpack.c.bf16 %v1099, %v1098
  %v1114 = vpack.c.bf16 %v1101, %v1100
  %v1115 = vpack.c.bf16 %v1103, %v1102
  %v1116 = vpack.c.bf16 %v1105, %v1104
  %v1117 = vpack.c.bf16 %v1107, %v1106
  %v1118 = vpack.c.bf16 %v1109, %v1108
  %v1119 = vld [vmem:[%s20] sm:$0x1]
  %v1121 = vperm.slane %v1119, 0
  %v1124 = vsel %vm327, %v1110, 0
  %v1127 = vsel %vm327, %v1111, 0
  %v1130 = vsel %vm327, %v1112, 0
  %v1133 = vsel %vm327, %v1113, 0
  %v1136 = vsel %vm327, %v1114, 0
  %v1139 = vsel %vm327, %v1115, 0
  %v1142 = vsel %vm327, %v1116, 0
  %v1145 = vsel %vm327, %v1117, 0
  %1147 = vmatpush.bf16.msra.mxu0 0
  %1148 = vmatpush.bf16.msra.mxu0 0
  %1149 = vmatpush.bf16.msra.mxu0 0
  %1150 = vmatpush.bf16.msra.mxu0 0
  %1151 = vmatpush.bf16.msra.mxu0 0
  %1152 = vmatpush.bf16.msra.mxu0 0
  %1153 = vmatpush.bf16.msra.mxu0 0
  %1154 = vmatpush.bf16.msra.mxu0 %v1118
  %1155 = vmatmul.bf16.gmra.mxu0 %v1124
  %v1156 = vpop.f32.mrf.mxu0
  %v1157 = vadd.f32 %v1121, %v1156
  %v1158 = vpop.f32.mrf.mxu0
  %v1159 = vadd.f32 %v1121, %v1158
  %1160 = vmatmul.bf16.gmra.mxu0 %v1127
  %v1161 = vpop.f32.mrf.mxu0
  %v1162 = vadd.f32 %v1121, %v1161
  %v1163 = vpop.f32.mrf.mxu0
  %v1164 = vadd.f32 %v1121, %v1163
  %1165 = vmatmul.bf16.gmra.mxu0 %v1130
  %v1166 = vpop.f32.mrf.mxu0
  %v1167 = vadd.f32 %v1121, %v1166
  %v1168 = vpop.f32.mrf.mxu0
  %v1169 = vadd.f32 %v1121, %v1168
  %1170 = vmatmul.bf16.gmra.mxu0 %v1133
  %v1171 = vpop.f32.mrf.mxu0
  %v1172 = vadd.f32 %v1121, %v1171
  %v1173 = vpop.f32.mrf.mxu0
  %v1174 = vadd.f32 %v1121, %v1173
  %1175 = vmatmul.bf16.gmra.mxu0 %v1136
  %v1176 = vpop.f32.mrf.mxu0
  %v1177 = vadd.f32 %v1121, %v1176
  %v1178 = vpop.f32.mrf.mxu0
  %v1179 = vadd.f32 %v1121, %v1178
  %1180 = vmatmul.bf16.gmra.mxu0 %v1139
  %v1181 = vpop.f32.mrf.mxu0
  %v1182 = vadd.f32 %v1121, %v1181
  %v1183 = vpop.f32.mrf.mxu0
  %v1184 = vadd.f32 %v1121, %v1183
  %1185 = vmatmul.bf16.gmra.mxu0 %v1142
  %v1186 = vpop.f32.mrf.mxu0
  %v1187 = vadd.f32 %v1121, %v1186
  %v1188 = vpop.f32.mrf.mxu0
  %v1189 = vadd.f32 %v1121, %v1188
  %1190 = vmatmul.bf16.gmra.mxu0 %v1145
  %v1191 = vpop.f32.mrf.mxu0
  %v1192 = vadd.f32 %v1121, %v1191
  %v1193 = vpop.f32.mrf.mxu0
  %v1194 = vadd.f32 %v1121, %v1193
  %1195 = vdwg.mxu0
  %v1196 = vld [vmem:[%s7] sm:$0xff]
  %v1197 = vld [vmem:[%s7 + $0x8] sm:$0xff]
  %v1198 = vld [vmem:[%s7 + $0x10] sm:$0xff]
  %v1199 = vld [vmem:[%s7 + $0x18] sm:$0xff]
  %v1200 = vld [vmem:[%s7 + $0x20] sm:$0xff]
  %v1201 = vld [vmem:[%s7 + $0x28] sm:$0xff]
  %v1202 = vld [vmem:[%s7 + $0x30] sm:$0xff]
  %v1203 = vld [vmem:[%s7 + $0x38] sm:$0xff]
  %v1204 = vld [vmem:[%s7 + $0x40] sm:$0xff]
  %v1205 = vld [vmem:[%s7 + $0x48] sm:$0xff]
  %v1206 = vld [vmem:[%s7 + $0x50] sm:$0xff]
  %v1207 = vld [vmem:[%s7 + $0x58] sm:$0xff]
  %v1208 = vld [vmem:[%s7 + $0x60] sm:$0xff]
  %v1209 = vld [vmem:[%s7 + $0x68] sm:$0xff]
  %v1210 = vld [vmem:[%s7 + $0x70] sm:$0xff]
  %v1211 = vld [vmem:[%s7 + $0x78] sm:$0xff]
  %1213 = vset.pattern.permute.xlu0 0
  %1214 = vperm.xlu0 %1213, %v1196
  %v1215 = vpop.permute.xlu0 %1214
  %1218 = vset.pattern.permute.xlu0 0
  %1219 = vperm.xlu0 %1218, %v1197
  %v1220 = vpop.permute.xlu0 %1219
  %1223 = vset.pattern.permute.xlu0 0
  %1224 = vperm.xlu0 %1223, %v1198
  %v1225 = vpop.permute.xlu0 %1224
  %1228 = vset.pattern.permute.xlu0 0
  %1229 = vperm.xlu0 %1228, %v1199
  %v1230 = vpop.permute.xlu0 %1229
  %1233 = vset.pattern.permute.xlu0 0
  %1234 = vperm.xlu0 %1233, %v1200
  %v1235 = vpop.permute.xlu0 %1234
  %1238 = vset.pattern.permute.xlu0 0
  %1239 = vperm.xlu0 %1238, %v1201
  %v1240 = vpop.permute.xlu0 %1239
  %1243 = vset.pattern.permute.xlu0 0
  %1244 = vperm.xlu0 %1243, %v1202
  %v1245 = vpop.permute.xlu0 %1244
  %1248 = vset.pattern.permute.xlu0 0
  %1249 = vperm.xlu0 %1248, %v1203
  %v1250 = vpop.permute.xlu0 %1249
  %1253 = vset.pattern.permute.xlu0 0
  %1254 = vperm.xlu0 %1253, %v1204
  %v1255 = vpop.permute.xlu0 %1254
  %1258 = vset.pattern.permute.xlu0 0
  %1259 = vperm.xlu0 %1258, %v1205
  %v1260 = vpop.permute.xlu0 %1259
  %1263 = vset.pattern.permute.xlu0 0
  %1264 = vperm.xlu0 %1263, %v1206
  %v1265 = vpop.permute.xlu0 %1264
  %1268 = vset.pattern.permute.xlu0 0
  %1269 = vperm.xlu0 %1268, %v1207
  %v1270 = vpop.permute.xlu0 %1269
  %1273 = vset.pattern.permute.xlu0 0
  %1274 = vperm.xlu0 %1273, %v1208
  %v1275 = vpop.permute.xlu0 %1274
  %1278 = vset.pattern.permute.xlu0 0
  %1279 = vperm.xlu0 %1278, %v1209
  %v1280 = vpop.permute.xlu0 %1279
  %1283 = vset.pattern.permute.xlu0 0
  %1284 = vperm.xlu0 %1283, %v1210
  %v1285 = vpop.permute.xlu0 %1284
  %1288 = vset.pattern.permute.xlu0 0
  %1289 = vperm.xlu0 %1288, %v1211
  %v1290 = vpop.permute.xlu0 %1289
  %v1292 = vmul.f32 %v1157, %v1215
  %v1293 = vmul.f32 %v1159, %v1220
  %v1294 = vmul.f32 %v1162, %v1225
  %v1295 = vmul.f32 %v1164, %v1230
  %v1296 = vmul.f32 %v1167, %v1235
  %v1297 = vmul.f32 %v1169, %v1240
  %v1298 = vmul.f32 %v1172, %v1245
  %v1299 = vmul.f32 %v1174, %v1250
  %v1300 = vmul.f32 %v1177, %v1255
  %v1301 = vmul.f32 %v1179, %v1260
  %v1302 = vmul.f32 %v1182, %v1265
  %v1303 = vmul.f32 %v1184, %v1270
  %v1304 = vmul.f32 %v1187, %v1275
  %v1305 = vmul.f32 %v1189, %v1280
  %v1306 = vmul.f32 %v1192, %v1285
  %v1307 = vmul.f32 %v1194, %v1290
  %1308 = vst.msk [vmem:[%s21] sm:$0xff] %vm327, %v1292
  %1309 = vst.msk [vmem:[%s21 + $0x8] sm:$0xff] %vm327, %v1293
  %1310 = vst.msk [vmem:[%s21 + $0x10] sm:$0xff] %vm327, %v1294
  %1311 = vst.msk [vmem:[%s21 + $0x18] sm:$0xff] %vm327, %v1295
  %1312 = vst.msk [vmem:[%s21 + $0x20] sm:$0xff] %vm327, %v1296
  %1313 = vst.msk [vmem:[%s21 + $0x28] sm:$0xff] %vm327, %v1297
  %1314 = vst.msk [vmem:[%s21 + $0x30] sm:$0xff] %vm327, %v1298
  %1315 = vst.msk [vmem:[%s21 + $0x38] sm:$0xff] %vm327, %v1299
  %1316 = vst.msk [vmem:[%s21 + $0x40] sm:$0xff] %vm327, %v1300
  %1317 = vst.msk [vmem:[%s21 + $0x48] sm:$0xff] %vm327, %v1301
  %1318 = vst.msk [vmem:[%s21 + $0x50] sm:$0xff] %vm327, %v1302
  %1319 = vst.msk [vmem:[%s21 + $0x58] sm:$0xff] %vm327, %v1303
  %1320 = vst.msk [vmem:[%s21 + $0x60] sm:$0xff] %vm327, %v1304
  %1321 = vst.msk [vmem:[%s21 + $0x68] sm:$0xff] %vm327, %v1305
  %1322 = vst.msk [vmem:[%s21 + $0x70] sm:$0xff] %vm327, %v1306
  %1323 = vst.msk [vmem:[%s21 + $0x78] sm:$0xff] %vm327, %v1307
  // Predicated region
  $region86: #{model_forward.4} parent=0 // pred_check
    _
  $region87: #{model_forward.4} parent=0 // pred_check_branch
    %1325 = sbr.rel (0) target = $region89
  $region88: #{model_forward.4} parent=0 // pred_region
    _
  $region89: #{model_forward.4} parent=0 // pred_fallthru
    _
  // Predicated region
  $region90: #{model_forward.4} parent=0 // pred_check
    _
  $region91: #{model_forward.4} parent=0 // pred_check_branch
    %1327 = sbr.rel (0) target = $region93
  $region92: #{model_forward.4} parent=0 // pred_region
    _
  $region93: #{model_forward.4} parent=0 // pred_fallthru
    _

// kernel: model_forward.5
$region0: #{model_forward.5}
  #allocation0 [shape = 'u32[]', space=smem, size = 0x4, offset = 0x4, fixed_abs, tag = 'smem constant byte address 0x4 - core index']
  #allocation1 [shape = 'u32[72,128]{1,0:T(1,128)}', space=vmem, size = 0x9000, scoped, tag = 'internal scratch']
  %s0 = inlined_call_operand.vmem [shape: f32[16,32], index: 0, kind: input, shape index: {}]
  %s1 = inlined_call_operand.vmem [shape: f32[16,32], index: 1, kind: input, shape index: {}]
  %s2 = inlined_call_operand.vmem [shape: f32[16,16], index: 2, kind: input, shape index: {}]
  %s3 = inlined_call_operand.vmem [shape: f32[16,96], index: 3, kind: input, shape index: {}]
  %s4 = inlined_call_operand.vmem [shape: f32[32,32], index: 4, kind: input, shape index: {}]
  %s5 = inlined_call_operand.vmem [shape: f32[32,32], index: 5, kind: input, shape index: {}]
  %s6 = inlined_call_operand.vmem [shape: f32[16,32], index: 6, kind: input, shape index: {}]
  %s7 = inlined_call_operand.vmem [shape: f32[1,32], index: 7, kind: input, shape index: {}]
  %s8 = inlined_call_operand.vmem [shape: f32[32,32], index: 8, kind: input, shape index: {}]
  %s9 = inlined_call_operand.vmem [shape: f32[1,32], index: 9, kind: input, shape index: {}]
  %s10 = inlined_call_operand.vmem [shape: f32[32,96], index: 10, kind: input, shape index: {}]
  %s11 = inlined_call_operand.vmem [shape: f32[96,96], index: 11, kind: input, shape index: {}]
  %s12 = inlined_call_operand.vmem [shape: f32[1,96], index: 12, kind: input, shape index: {}]
  %s13 = inlined_call_operand.vmem [shape: f32[96,128], index: 13, kind: input, shape index: {}]
  %s14 = inlined_call_operand.vmem [shape: f32[1,128], index: 14, kind: input, shape index: {}]
  %s15 = inlined_call_operand.vmem [shape: f32[16,128], index: 15, kind: output, shape index: {}]
  %s16 = sld [smem:[#allocation0]]
  $region70: #{model_forward.5} parent=0
    _
  %s18 = ssub.s32 1, %s16
  %s19 = scalar_select 0, %s18, %s16
  // Predicated region
  $region2: #{model_forward.5} parent=0 // pred_check
    _
  $region3: #{model_forward.5} parent=0 // pred_check_branch
    %21 = sbr.rel (0) target = $region5
  $region4: #{model_forward.5} parent=0 // pred_region
    _
  $region5: #{model_forward.5} parent=0 // pred_fallthru
    _
  // Predicated region
  $region6: #{model_forward.5} parent=0 // pred_check
    _
  $region7: #{model_forward.5} parent=0 // pred_check_branch
    %23 = sbr.rel (0) target = $region9
  $region8: #{model_forward.5} parent=0 // pred_region
    _
  $region9: #{model_forward.5} parent=0 // pred_fallthru
    _
  // Predicated region
  $region10: #{model_forward.5} parent=0 // pred_check
    _
  $region11: #{model_forward.5} parent=0 // pred_check_branch
    %25 = sbr.rel (0) target = $region13
  $region12: #{model_forward.5} parent=0 // pred_region
    _
  $region13: #{model_forward.5} parent=0 // pred_fallthru
    _
  // Predicated region
  $region14: #{model_forward.5} parent=0 // pred_check
    _
  $region15: #{model_forward.5} parent=0 // pred_check_branch
    %27 = sbr.rel (0) target = $region17
  $region16: #{model_forward.5} parent=0 // pred_region
    _
  $region17: #{model_forward.5} parent=0 // pred_fallthru
    _
  // Predicated region
  $region18: #{model_forward.5} parent=0 // pred_check
    _
  $region19: #{model_forward.5} parent=0 // pred_check_branch
    %29 = sbr.rel (0) target = $region21
  $region20: #{model_forward.5} parent=0 // pred_region
    _
  $region21: #{model_forward.5} parent=0 // pred_fallthru
    _
  // Predicated region
  $region22: #{model_forward.5} parent=0 // pred_check
    _
  $region23: #{model_forward.5} parent=0 // pred_check_branch
    %31 = sbr.rel (0) target = $region25
  $region24: #{model_forward.5} parent=0 // pred_region
    _
  $region25: #{model_forward.5} parent=0 // pred_fallthru
    _
  // Predicated region
  $region26: #{model_forward.5} parent=0 // pred_check
    _
  $region27: #{model_forward.5} parent=0 // pred_check_branch
    %33 = sbr.rel (0) target = $region29
  $region28: #{model_forward.5} parent=0 // pred_region
    _
  $region29: #{model_forward.5} parent=0 // pred_fallthru
    _
  // Predicated region
  $region30: #{model_forward.5} parent=0 // pred_check
    _
  $region31: #{model_forward.5} parent=0 // pred_check_branch
    %35 = sbr.rel (0) target = $region33
  $region32: #{model_forward.5} parent=0 // pred_region
    _
  $region33: #{model_forward.5} parent=0 // pred_fallthru
    _
  // Predicated region
  $region34: #{model_forward.5} parent=0 // pred_check
    _
  $region35: #{model_forward.5} parent=0 // pred_check_branch
    %37 = sbr.rel (0) target = $region37
  $region36: #{model_forward.5} parent=0 // pred_region
    _
  $region37: #{model_forward.5} parent=0 // pred_fallthru
    _
  // Predicated region
  $region38: #{model_forward.5} parent=0 // pred_check
    _
  $region39: #{model_forward.5} parent=0 // pred_check_branch
    %39 = sbr.rel (0) target = $region41
  $region40: #{model_forward.5} parent=0 // pred_region
    _
  $region41: #{model_forward.5} parent=0 // pred_fallthru
    _
  // Predicated region
  $region42: #{model_forward.5} parent=0 // pred_check
    _
  $region43: #{model_forward.5} parent=0 // pred_check_branch
    %41 = sbr.rel (0) target = $region45
  $region44: #{model_forward.5} parent=0 // pred_region
    _
  $region45: #{model_forward.5} parent=0 // pred_fallthru
    _
  // Predicated region
  $region46: #{model_forward.5} parent=0 // pred_check
    _
  $region47: #{model_forward.5} parent=0 // pred_check_branch
    %43 = sbr.rel (0) target = $region49
  $region48: #{model_forward.5} parent=0 // pred_region
    _
  $region49: #{model_forward.5} parent=0 // pred_fallthru
    _
  // Predicated region
  $region50: #{model_forward.5} parent=0 // pred_check
    _
  $region51: #{model_forward.5} parent=0 // pred_check_branch
    %45 = sbr.rel (0) target = $region53
  $region52: #{model_forward.5} parent=0 // pred_region
    _
  $region53: #{model_forward.5} parent=0 // pred_fallthru
    _
  // Predicated region
  $region54: #{model_forward.5} parent=0 // pred_check
    _
  $region55: #{model_forward.5} parent=0 // pred_check_branch
    %47 = sbr.rel (0) target = $region57
  $region56: #{model_forward.5} parent=0 // pred_region
    _
  $region57: #{model_forward.5} parent=0 // pred_fallthru
    _
  // Predicated region
  $region58: #{model_forward.5} parent=0 // pred_check
    _
  $region59: #{model_forward.5} parent=0 // pred_check_branch
    %49 = sbr.rel (0) target = $region61
  $region60: #{model_forward.5} parent=0 // pred_region
    _
  $region61: #{model_forward.5} parent=0 // pred_fallthru
    _
  %v51 = vld [vmem:[%s0] sm:$0xff]
  %v52 = vld [vmem:[%s0 + $0x8] sm:$0xff]
  %v53 = vld [vmem:[%s4] sm:$0xff]
  %v54 = vld [vmem:[%s4 + $0x8] sm:$0xff]
  %v55 = vld [vmem:[%s4 + $0x10] sm:$0xff]
  %v56 = vld [vmem:[%s4 + $0x18] sm:$0xff]
  %v57 = vpack.c.bf16 %v52, %v51
  %v58 = vpack.c.bf16 %v54, %v53
  %v59 = vpack.c.bf16 %v56, %v55
  %v60 = vld [vmem:[%s1] sm:$0xff]
  %v61 = vld [vmem:[%s1 + $0x8] sm:$0xff]
  %v62 = vld [vmem:[%s5] sm:$0xff]
  %v63 = vld [vmem:[%s5 + $0x8] sm:$0xff]
  %v64 = vld [vmem:[%s5 + $0x10] sm:$0xff]
  %v65 = vld [vmem:[%s5 + $0x18] sm:$0xff]
  %v66 = vpack.c.bf16 %v61, %v60
  %v67 = vpack.c.bf16 %v63, %v62
  %v68 = vpack.c.bf16 %v65, %v64
  %vm69 = vcmask 261120
  %v71 = vsel %vm69, %v66, 0
  %73 = vmatpush.bf16.msra.mxu0 0
  %74 = vmatpush.bf16.msra.mxu0 0
  %75 = vmatpush.bf16.msra.mxu0 0
  %76 = vmatpush.bf16.msra.mxu0 0
  %77 = vmatpush.bf16.msra.mxu0 0
  %78 = vmatpush.bf16.msra.mxu0 0
  %79 = vmatpush.bf16.msra.mxu0 %v68
  %80 = vmatpush.bf16.msra.mxu0 %v67
  %81 = vmatmul.bf16.gmra.mxu0 %v71
  %v82 = vpop.f32.mrf.mxu0
  %v83 = vadd.f32 0.0, %v82
  %v84 = vpop.f32.mrf.mxu0
  %v85 = vadd.f32 0.0, %v84
  %86 = vdwg.mxu0
  %v88 = vsel %vm69, %v57, 0
  %90 = vmatpush.bf16.msra.mxu0 0
  %91 = vmatpush.bf16.msra.mxu0 0
  %92 = vmatpush.bf16.msra.mxu0 0
  %93 = vmatpush.bf16.msra.mxu0 0
  %94 = vmatpush.bf16.msra.mxu0 0
  %95 = vmatpush.bf16.msra.mxu0 0
  %96 = vmatpush.bf16.msra.mxu0 %v59
  %97 = vmatpush.bf16.msra.mxu0 %v58
  %98 = vmatmul.bf16.gmra.mxu0 %v88
  %v99 = vpop.f32.mrf.mxu0
  %v100 = vadd.f32 %v83, %v99
  %v101 = vpop.f32.mrf.mxu0
  %v102 = vadd.f32 %v85, %v101
  %103 = vdwg.mxu0
  %v104 = vld [vmem:[%s2] sm:$0xff]
  %v105 = vld [vmem:[%s2 + $0x8] sm:$0xff]
  %v106 = vld [vmem:[%s6] sm:$0xff]
  %v107 = vld [vmem:[%s6 + $0x8] sm:$0xff]
  %v108 = vpack.c.bf16 %v105, %v104
  %v109 = vpack.c.bf16 %v107, %v106
  %vm110 = vcmask 130048
  %v112 = vsel %vm110, %v108, 0
  %114 = vmatpush.bf16.msra.mxu0 0
  %115 = vmatpush.bf16.msra.mxu0 0
  %116 = vmatpush.bf16.msra.mxu0 0
  %117 = vmatpush.bf16.msra.mxu0 0
  %118 = vmatpush.bf16.msra.mxu0 0
  %119 = vmatpush.bf16.msra.mxu0 0
  %120 = vmatpush.bf16.msra.mxu0 0
  %121 = vmatpush.bf16.msra.mxu0 %v109
  %122 = vmatmul.bf16.gmra.mxu0 %v112
  %v123 = vpop.f32.mrf.mxu0
  %v124 = vadd.f32 0.0, %v123
  %v125 = vpop.f32.mrf.mxu0
  %v126 = vadd.f32 0.0, %v125
  %127 = vdwg.mxu0
  %v128 = vadd.f32 %v100, %v124
  %v129 = vadd.f32 %v102, %v126
  %v130 = vld [vmem:[%s7] sm:$0x1]
  %v132 = vperm.slane %v130, 0
  %v134 = vadd.f32 %v128, %v132
  %v135 = vadd.f32 %v129, %v132
  %v136 = vmax.f32 %v134, 0.0
  %v137 = vmax.f32 %v135, 0.0
  %v138 = vld [vmem:[%s8] sm:$0xff]
  %v139 = vld [vmem:[%s8 + $0x8] sm:$0xff]
  %v140 = vld [vmem:[%s8 + $0x10] sm:$0xff]
  %v141 = vld [vmem:[%s8 + $0x18] sm:$0xff]
  %v142 = vpack.c.bf16 %v137, %v136
  %v143 = vpack.c.bf16 %v139, %v138
  %v144 = vpack.c.bf16 %v141, %v140
  %v145 = vld [vmem:[%s9] sm:$0x1]
  %v147 = vperm.slane %v145, 0
  %v150 = vsel %vm69, %v142, 0
  %152 = vmatpush.bf16.msra.mxu0 0
  %153 = vmatpush.bf16.msra.mxu0 0
  %154 = vmatpush.bf16.msra.mxu0 0
  %155 = vmatpush.bf16.msra.mxu0 0
  %156 = vmatpush.bf16.msra.mxu0 0
  %157 = vmatpush.bf16.msra.mxu0 0
  %158 = vmatpush.bf16.msra.mxu0 %v144
  %159 = vmatpush.bf16.msra.mxu0 %v143
  %160 = vmatmul.bf16.gmra.mxu0 %v150
  %v161 = vpop.f32.mrf.mxu0
  %v162 = vadd.f32 %v147, %v161
  %v163 = vpop.f32.mrf.mxu0
  %v164 = vadd.f32 %v147, %v163
  %165 = vdwg.mxu0
  %v166 = vld [vmem:[%s10] sm:$0xff]
  %v167 = vld [vmem:[%s10 + $0x8] sm:$0xff]
  %v168 = vld [vmem:[%s10 + $0x10] sm:$0xff]
  %v169 = vld [vmem:[%s10 + $0x18] sm:$0xff]
  %v170 = vpack.c.bf16 %v164, %v162
  %v171 = vpack.c.bf16 %v167, %v166
  %v172 = vpack.c.bf16 %v169, %v168
  %v173 = vld [vmem:[%s3] sm:$0xff]
  %v174 = vld [vmem:[%s3 + $0x8] sm:$0xff]
  %v176 = vsel %vm69, %v170, 0
  %178 = vmatpush.bf16.msra.mxu0 0
  %179 = vmatpush.bf16.msra.mxu0 0
  %180 = vmatpush.bf16.msra.mxu0 0
  %181 = vmatpush.bf16.msra.mxu0 0
  %182 = vmatpush.bf16.msra.mxu0 0
  %183 = vmatpush.bf16.msra.mxu0 0
  %184 = vmatpush.bf16.msra.mxu0 %v172
  %185 = vmatpush.bf16.msra.mxu0 %v171
  %186 = vmatmul.bf16.gmra.mxu0 %v176
  %v187 = vpop.f32.mrf.mxu0
  %v188 = vadd.f32 %v173, %v187
  %v189 = vpop.f32.mrf.mxu0
  %v190 = vadd.f32 %v174, %v189
  %191 = vdwg.mxu0
  %v192 = vmax.f32 %v188, 0.0
  %v193 = vmax.f32 %v190, 0.0
  %v194 = vld [vmem:[%s11] sm:$0xff]
  %v195 = vld [vmem:[%s11 + $0x8] sm:$0xff]
  %v196 = vld [vmem:[%s11 + $0x10] sm:$0xff]
  %v197 = vld [vmem:[%s11 + $0x18] sm:$0xff]
  %v198 = vld [vmem:[%s11 + $0x20] sm:$0xff]
  %v199 = vld [vmem:[%s11 + $0x28] sm:$0xff]
  %v200 = vld [vmem:[%s11 + $0x30] sm:$0xff]
  %v201 = vld [vmem:[%s11 + $0x38] sm:$0xff]
  %v202 = vld [vmem:[%s11 + $0x40] sm:$0xff]
  %v203 = vld [vmem:[%s11 + $0x48] sm:$0xff]
  %v204 = vld [vmem:[%s11 + $0x50] sm:$0xff]
  %v205 = vld [vmem:[%s11 + $0x58] sm:$0xff]
  %v206 = vpack.c.bf16 %v193, %v192
  %v207 = vpack.c.bf16 %v195, %v194
  %v208 = vpack.c.bf16 %v197, %v196
  %v209 = vpack.c.bf16 %v199, %v198
  %v210 = vpack.c.bf16 %v201, %v200
  %v211 = vpack.c.bf16 %v203, %v202
  %v212 = vpack.c.bf16 %v205, %v204
  %v213 = vld [vmem:[%s12] sm:$0x1]
  %v215 = vperm.slane %v213, 0
  %vm217 = vcmask 785408
  %v219 = vsel %vm217, %v206, 0
  %221 = vmatpush.bf16.msra.mxu0 0
  %222 = vmatpush.bf16.msra.mxu0 0
  %223 = vmatpush.bf16.msra.mxu0 %v212
  %224 = vmatpush.bf16.msra.mxu0 %v211
  %225 = vmatpush.bf16.msra.mxu0 %v210
  %226 = vmatpush.bf16.msra.mxu0 %v209
  %227 = vmatpush.bf16.msra.mxu0 %v208
  %228 = vmatpush.bf16.msra.mxu0 %v207
  %229 = vmatmul.bf16.gmra.mxu0 %v219
  %v230 = vpop.f32.mrf.mxu0
  %v231 = vadd.f32 %v215, %v230
  %v232 = vpop.f32.mrf.mxu0
  %v233 = vadd.f32 %v215, %v232
  %234 = vdwg.mxu0
  %v235 = vmax.f32 %v231, 0.0
  %v236 = vmax.f32 %v233, 0.0
  %v237 = vld [vmem:[%s13] sm:$0xff]
  %v238 = vld [vmem:[%s13 + $0x8] sm:$0xff]
  %v239 = vld [vmem:[%s13 + $0x10] sm:$0xff]
  %v240 = vld [vmem:[%s13 + $0x18] sm:$0xff]
  %v241 = vld [vmem:[%s13 + $0x20] sm:$0xff]
  %v242 = vld [vmem:[%s13 + $0x28] sm:$0xff]
  %v243 = vld [vmem:[%s13 + $0x30] sm:$0xff]
  %v244 = vld [vmem:[%s13 + $0x38] sm:$0xff]
  %v245 = vld [vmem:[%s13 + $0x40] sm:$0xff]
  %v246 = vld [vmem:[%s13 + $0x48] sm:$0xff]
  %v247 = vld [vmem:[%s13 + $0x50] sm:$0xff]
  %v248 = vld [vmem:[%s13 + $0x58] sm:$0xff]
  %v249 = vpack.c.bf16 %v236, %v235
  %v250 = vpack.c.bf16 %v238, %v237
  %v251 = vpack.c.bf16 %v240, %v239
  %v252 = vpack.c.bf16 %v242, %v241
  %v253 = vpack.c.bf16 %v244, %v243
  %v254 = vpack.c.bf16 %v246, %v245
  %v255 = vpack.c.bf16 %v248, %v247
  %v256 = vld [vmem:[%s14] sm:$0x1]
  %v258 = vperm.slane %v256, 0
  %v261 = vsel %vm217, %v249, 0
  %263 = vmatpush.bf16.msra.mxu0 0
  %264 = vmatpush.bf16.msra.mxu0 0
  %265 = vmatpush.bf16.msra.mxu0 %v255
  %266 = vmatpush.bf16.msra.mxu0 %v254
  %267 = vmatpush.bf16.msra.mxu0 %v253
  %268 = vmatpush.bf16.msra.mxu0 %v252
  %269 = vmatpush.bf16.msra.mxu0 %v251
  %270 = vmatpush.bf16.msra.mxu0 %v250
  %271 = vmatmul.bf16.gmra.mxu0 %v261
  %v272 = vpop.f32.mrf.mxu0
  %v273 = vadd.f32 %v258, %v272
  %v274 = vpop.f32.mrf.mxu0
  %v275 = vadd.f32 %v258, %v274
  %276 = vdwg.mxu0
  %v277 = vlaneseq
  %v278 = vand.u32 %v277, 127
  %vm279 = vcmp.ge.s32.totalorder %v278, 6
  %vm280 = vcmp.lt.s32.totalorder %v278, 26
  %vm281 = vmand %vm279, %vm280
  %v282 = vsel %vm281, %v273, -1e+30
  %v283 = vsel %vm281, %v275, -1e+30
  %284 = vmax.xlane.f32.xlu0 %v282
  %v285 = vpop.xlane.xlu0 %284
  %286 = vmax.xlane.f32.xlu0 %v283
  %v287 = vpop.xlane.xlu0 %286
  %v288 = vsub.f32 %v282, %v285
  %v289 = vsub.f32 %v283, %v287
  %v290 = vmul.f32 %v288, 1.442695
  %v291 = vpow.pop %v290
  %v292 = vmul.f32 %v289, 1.442695
  %v293 = vpow.pop %v292
  %294 = vadd.xlane.f32.xlu0 %v291
  %v295 = vpop.xlane.xlu0 %294
  %296 = vadd.xlane.f32.xlu0 %v293
  %v297 = vpop.xlane.xlu0 %296
  %v298 = vrcp.pop %v295
  %v299 = vrcp.pop %v297
  %v300 = vmul.f32 %v291, %v298
  %v301 = vmul.f32 %v293, %v299
  %v302 = vsel %vm281, %v300, %v273
  %v303 = vsel %vm281, %v301, %v275
  %304 = vst [vmem:[%s15] sm:$0xff] %v302
  %305 = vst [vmem:[%s15 + $0x8] sm:$0xff] %v303
  // Predicated region
  $region62: #{model_forward.5} parent=0 // pred_check
    _
  $region63: #{model_forward.5} parent=0 // pred_check_branch
    %307 = sbr.rel (0) target = $region65
  $region64: #{model_forward.5} parent=0 // pred_region
    _
  $region65: #{model_forward.5} parent=0 // pred_fallthru
    _
  // Predicated region
  $region66: #{model_forward.5} parent=0 // pred_check
    _
  $region67: #{model_forward.5} parent=0 // pred_check_branch
    %309 = sbr.rel (0) target = $region69
  $region68: #{model_forward.5} parent=0 // pred_region
    _
  $region69: #{model_forward.5} parent=0 // pred_fallthru
    _

</llo_original>
